<compile_context>
chip_gen: v5e
topology: v5e:2x2
jax: 0.10.0
libtpu: 0.0.40
codegen_flags: <defaults>
</compile_context>

<pallas_src>
import functools

import jax
import jax.numpy as jnp
from jax.experimental import pallas as pl
from jax.experimental.pallas import tpu as pltpu


# -----------------------------------------------------------------------------
# Kernel 1: input projection for both directions in one wide (nIn, 8H) matmul.
# -----------------------------------------------------------------------------
def inproj_kernel(x_ref, w_ref, b_ref, gf_ref, gb_ref):
    g = (jnp.dot(x_ref[...], w_ref[...], preferred_element_type=jnp.float32)
         + b_ref[...])                                   # (M, 8H)
    g4 = gf_ref.shape[-1]                                # 4H (lane-aligned: 128*k)
    gf_ref[...] = g[:, :g4]
    gb_ref[...] = g[:, g4:]


def input_projection(x_flat, w_cat, b_cat):
    # Single-block call (shapes here are tiny); larger T*B would tile rows.
    M, nIn = x_flat.shape
    G8 = w_cat.shape[1]
    G4 = G8 // 2
    return pl.pallas_call(
        inproj_kernel,
        out_shape=(jax.ShapeDtypeStruct((M, G4), jnp.float32),
                   jax.ShapeDtypeStruct((M, G4), jnp.float32)),
        grid_spec=pltpu.PrefetchScalarGridSpec(
            num_scalar_prefetch=0,
            grid=(1,),
            in_specs=[pl.BlockSpec((M, nIn), lambda i: (0, 0)),
                      pl.BlockSpec((nIn, G8), lambda i: (0, 0)),
                      pl.BlockSpec((1, G8), lambda i: (0, 0))],
            out_specs=[pl.BlockSpec((M, G4), lambda i: (0, 0)),
                       pl.BlockSpec((M, G4), lambda i: (0, 0))]),
        compiler_params=pltpu.CompilerParams(
            dimension_semantics=("arbitrary",)),
    )(x_flat, w_cat, b_cat)


# -----------------------------------------------------------------------------
# Kernel 2: bidirectional LSTM recurrence, TT timesteps per grid invocation.
# -----------------------------------------------------------------------------
def lstm_kernel(gin_f_ref, gin_b_ref, w_hh_ref, hf_out, hb_out, h_s, c_s):
    # gin_f_ref : (TT, B, 4H)  precomputed x@W_ih_f + b_f, forward time chunk c
    # gin_b_ref : (TT, B, 4H)  precomputed x@W_ih_b + b_b, reversed time chunk
    # w_hh_ref  : (H, 8H) = [W_hh_f | W_hh_b]
    # hf_out    : (TT, B, H)   forward hidden states for chunk c
    # hb_out    : (TT, B, H)   backward hidden states for the reversed chunk
    # h_s, c_s  : (2B, H) scratch; rows [:B] = forward state, rows [B:] = backward
    c = pl.program_id(0)
    TT, B, _ = gin_f_ref.shape
    H = w_hh_ref.shape[0]

    @pl.when(c == 0)
    def _():
        h_s[...] = jnp.zeros_like(h_s)
        c_s[...] = jnp.zeros_like(c_s)

    def step(s, carry):
        h_all, c_all = carry                             # (2B, H), (2B, H)
        # One 8H-wide recurrent matmul serving both directions (256 MXU lanes).
        rec = jnp.dot(h_all, w_hh_ref[...],
                      preferred_element_type=jnp.float32)  # (2B, 8H)
        g_f = gin_f_ref[s] + rec[:B, :4 * H]             # (B, 4H) fwd, time t
        g_b = gin_b_ref[TT - 1 - s] + rec[B:, 4 * H:]    # (B, 4H) bwd, time T-1-t
        gates = jnp.concatenate([g_f, g_b], axis=0)      # (2B, 4H) stacked elementwise
        i = jax.nn.sigmoid(gates[:, 0 * H:1 * H])
        f = jax.nn.sigmoid(gates[:, 1 * H:2 * H])
        g = jnp.tanh(gates[:, 2 * H:3 * H])
        o = jax.nn.sigmoid(gates[:, 3 * H:4 * H])
        c_new = f * c_all + i * g
        h_new = o * jnp.tanh(c_new)
        hf_out[s] = h_new[:B]
        hb_out[TT - 1 - s] = h_new[B:]
        return h_new, c_new

    h_fin, c_fin = jax.lax.fori_loop(0, TT, step, (h_s[...], c_s[...]),
                                     unroll=True)
    h_s[...] = h_fin
    c_s[...] = c_fin


# -----------------------------------------------------------------------------
# Kernel 3: embedding Linear over ALL T*B rows at once (lane/sublane dense).
# -----------------------------------------------------------------------------
def embed_kernel(hf_ref, hb_ref, wf_ref, wb_ref, b_ref, o_ref):
    o_ref[...] = (jnp.dot(hf_ref[...], wf_ref[...], preferred_element_type=jnp.float32)
                  + jnp.dot(hb_ref[...], wb_ref[...], preferred_element_type=jnp.float32)
                  + b_ref[...])


def embedding(hf_flat, hb_flat, w_f, w_b, b):
    M, H = hf_flat.shape
    nOut = w_f.shape[1]
    return pl.pallas_call(
        embed_kernel,
        out_shape=jax.ShapeDtypeStruct((M, nOut), jnp.float32),
        grid_spec=pltpu.PrefetchScalarGridSpec(
            num_scalar_prefetch=0,
            grid=(1,),
            in_specs=[pl.BlockSpec((M, H), lambda i: (0, 0)),
                      pl.BlockSpec((M, H), lambda i: (0, 0)),
                      pl.BlockSpec((H, nOut), lambda i: (0, 0)),
                      pl.BlockSpec((H, nOut), lambda i: (0, 0)),
                      pl.BlockSpec((1, nOut), lambda i: (0, 0))],
            out_specs=pl.BlockSpec((M, nOut), lambda i: (0, 0))),
        compiler_params=pltpu.CompilerParams(
            dimension_semantics=("arbitrary",)),
    )(hf_flat, hb_flat, w_f, w_b, b)


# -----------------------------------------------------------------------------
# Wrapper
# -----------------------------------------------------------------------------
@functools.partial(jax.jit, static_argnames=("tt",))
def bidirectional_lstm(x, params, tt=4):
    T, B, nIn = x.shape
    H = params["w_hh_f"].shape[0]
    nOut = params["w_emb_f"].shape[1]
    assert T % tt == 0, "time chunk must divide T"
    nC = T // tt

    # One-time weight packing (wide layouts for the MXU).
    w_ih_cat = jnp.concatenate([params["w_ih_f"], params["w_ih_b"]], axis=1)  # (nIn, 8H)
    b_cat = jnp.concatenate([params["b_f"], params["b_b"]], axis=1)           # (1, 8H)
    w_hh_cat = jnp.concatenate([params["w_hh_f"], params["w_hh_b"]], axis=1)  # (H, 8H)

    # ---- Kernel 1: hoisted input projection (+ folded biases) ----
    x_flat = x.reshape(T * B, nIn)
    gf_flat, gb_flat = input_projection(x_flat, w_ih_cat, b_cat)
    gin_f = gf_flat.reshape(T, B, 4 * H)   # natural time order
    gin_b = gb_flat.reshape(T, B, 4 * H)   # natural time order (kernel reverses it)

    # ---- Kernel 2: time-chunked bidirectional recurrence ----
    h_fwd, h_bwd = pl.pallas_call(
        lstm_kernel,
        out_shape=(jax.ShapeDtypeStruct((T, B, H), jnp.float32),
                   jax.ShapeDtypeStruct((T, B, H), jnp.float32)),
        grid_spec=pltpu.PrefetchScalarGridSpec(
            num_scalar_prefetch=0,
            grid=(nC,),
            in_specs=[
                pl.BlockSpec((tt, B, 4 * H), lambda c: (c, 0, 0)),           # fwd chunk
                pl.BlockSpec((tt, B, 4 * H), lambda c: (nC - 1 - c, 0, 0)),  # bwd chunk
                pl.BlockSpec((H, 8 * H), lambda c: (0, 0)),                  # [W_hh_f|W_hh_b]
            ],
            out_specs=[
                pl.BlockSpec((tt, B, H), lambda c: (c, 0, 0)),
                pl.BlockSpec((tt, B, H), lambda c: (nC - 1 - c, 0, 0)),
            ],
            scratch_shapes=[
                pltpu.VMEM((2 * B, H), jnp.float32),   # h state (fwd rows, bwd rows)
                pltpu.VMEM((2 * B, H), jnp.float32),   # c state
            ]),
        compiler_params=pltpu.CompilerParams(
            dimension_semantics=("arbitrary",)),       # sequential recurrence
    )(gin_f, gin_b, w_hh_cat)

    # ---- Kernel 3: embedding over all T*B rows in one matmul ----
    out_flat = embedding(h_fwd.reshape(T * B, H), h_bwd.reshape(T * B, H),
                         params["w_emb_f"], params["w_emb_b"], params["b_emb"])
    return out_flat.reshape(T, B, nOut)


# -----------------------------------------------------------------------------
# Pure-JAX reference (for correctness check)
# -----------------------------------------------------------------------------
def _lstm_ref_dir(x, w_ih, w_hh, b):
    T, B, _ = x.shape
    H = w_hh.shape[0]

    def step(carry, xt):
        h, c = carry
        gates = xt @ w_ih + h @ w_hh + b
        i = jax.nn.sigmoid(gates[:, 0 * H:1 * H])
        f = jax.nn.sigmoid(gates[:, 1 * H:2 * H])
        g = jnp.tanh(gates[:, 2 * H:3 * H])
        o = jax.nn.sigmoid(gates[:, 3 * H:4 * H])
        c = f * c + i * g
        h = o * jnp.tanh(c)
        return (h, c), h

    init = (jnp.zeros((B, H), jnp.float32), jnp.zeros((B, H), jnp.float32))
    _, hs = jax.lax.scan(step, init, x)
    return hs


def bidirectional_lstm_ref(x, params):
    T, B, _ = x.shape
    hf = _lstm_ref_dir(x, params["w_ih_f"], params["w_hh_f"], params["b_f"])
    hb = _lstm_ref_dir(x[::-1], params["w_ih_b"], params["w_hh_b"], params["b_b"])[::-1]
    rec = jnp.concatenate([hf, hb], axis=-1)                                  # (T, B, 2H)
    w_emb = jnp.concatenate([params["w_emb_f"], params["w_emb_b"]], axis=0)   # (2H, nOut)
    out = rec.reshape(T * B, -1) @ w_emb + params["b_emb"]
    return out.reshape(T, B, -1)


# -----------------------------------------------------------------------------
def make_params(key, nIn, nHidden, nOut):
    ks = jax.random.split(key, 9)
    s = 0.1
    return {
        "w_ih_f": s * jax.random.normal(ks[0], (nIn, 4 * nHidden), jnp.float32),
        "w_hh_f": s * jax.random.normal(ks[1], (nHidden, 4 * nHidden), jnp.float32),
        "b_f":    s * jax.random.normal(ks[2], (1, 4 * nHidden), jnp.float32),
        "w_ih_b": s * jax.random.normal(ks[3], (nIn, 4 * nHidden), jnp.float32),
        "w_hh_b": s * jax.random.normal(ks[4], (nHidden, 4 * nHidden), jnp.float32),
        "b_b":    s * jax.random.normal(ks[5], (1, 4 * nHidden), jnp.float32),
        "w_emb_f": s * jax.random.normal(ks[6], (nHidden, nOut), jnp.float32),
        "w_emb_b": s * jax.random.normal(ks[7], (nHidden, nOut), jnp.float32),
        "b_emb":   s * jax.random.normal(ks[8], (1, nOut), jnp.float32),
    }


if __name__ == "__main__":
    T, B, nIn, nHidden, nOut = 8, 2, 32, 32, 16

    key = jax.random.PRNGKey(0)
    kx, kp = jax.random.split(key)
    x = jax.random.normal(kx, (T, B, nIn), jnp.float32)   # (seq_len, batch, nIn)
    params = make_params(kp, nIn, nHidden, nOut)

    out = bidirectional_lstm(x, params, tt=4)   # 2 time chunks of 4 steps each
    out = jax.block_until_ready(out)

    ref = bidirectional_lstm_ref(x, params)
    assert out.shape == (T, B, nOut), out.shape
    assert jnp.allclose(out, ref, atol=1e-4, rtol=1e-4), \
        float(jnp.max(jnp.abs(out - ref)))

    print("KERNEL_OK")
</pallas_src>

<mosaic_0001>
module attributes {stable_mosaic.version = 11 : i64} {
  func.func @inproj_kernel(%arg0: i32, %arg1: memref<16x32xf32, #tpu.memory_space<vmem>>, %arg2: memref<32x256xf32, #tpu.memory_space<vmem>>, %arg3: memref<1x256xf32, #tpu.memory_space<vmem>>, %arg4: memref<16x128xf32, #tpu.memory_space<vmem>>, %arg5: memref<16x128xf32, #tpu.memory_space<vmem>>) attributes {dimension_semantics = [#tpu.dimension_semantics<arbitrary>], iteration_bounds = array<i64: 1>, scalar_prefetch = 0 : i64, scratch_operands = 0 : i64, tpu.core_type = #tpu.core_type<tc>, window_params = [{pipeline_mode = #tpu.pipeline_mode<synchronous>, transform_indices = @transform_0, window_bounds = array<i64: 16, 32>}, {pipeline_mode = #tpu.pipeline_mode<synchronous>, transform_indices = @transform_1, window_bounds = array<i64: 32, 256>}, {pipeline_mode = #tpu.pipeline_mode<synchronous>, transform_indices = @transform_2, window_bounds = array<i64: 1, 256>}, {pipeline_mode = #tpu.pipeline_mode<synchronous>, transform_indices = @transform_3, window_bounds = array<i64: 16, 128>}, {pipeline_mode = #tpu.pipeline_mode<synchronous>, transform_indices = @transform_4, window_bounds = array<i64: 16, 128>}]} {
    %c0 = arith.constant 0 : index
    %c0_0 = arith.constant 0 : index
    %0 = vector.load %arg1[%c0, %c0_0] : memref<16x32xf32, #tpu.memory_space<vmem>>, vector<16x32xf32>
    %c0_1 = arith.constant 0 : index
    %c0_2 = arith.constant 0 : index
    %1 = vector.load %arg2[%c0_1, %c0_2] : memref<32x256xf32, #tpu.memory_space<vmem>>, vector<32x256xf32>
    %cst = arith.constant dense<0.000000e+00> : vector<16x256xf32>
    %2 = tpu.matmul %0, %1, %cst {dimension_numbers = #tpu.dot_dimension_numbers<[1], [0], [0], [1], [0, 0, 1, 1], [], []>} : vector<16x32xf32>, vector<32x256xf32>, vector<16x256xf32> -> vector<16x256xf32>
    %c0_3 = arith.constant 0 : index
    %c0_4 = arith.constant 0 : index
    %3 = vector.load %arg3[%c0_3, %c0_4] : memref<1x256xf32, #tpu.memory_space<vmem>>, vector<1x256xf32>
    %4 = vector.broadcast %3 : vector<1x256xf32> to vector<16x256xf32>
    %5 = arith.addf %2, %4 : vector<16x256xf32>
    %6 = vector.extract_strided_slice %5 {offsets = [0, 0], sizes = [16, 128], strides = [1, 1]} : vector<16x256xf32> to vector<16x128xf32>
    %c0_5 = arith.constant 0 : index
    %c0_6 = arith.constant 0 : index
    %7 = vector.load %arg4[%c0_5, %c0_6] : memref<16x128xf32, #tpu.memory_space<vmem>>, vector<16x128xf32>
    tpu.vector_store %arg4[%c0_5, %c0_6], %6 {strides = array<i32>} : memref<16x128xf32, #tpu.memory_space<vmem>>, vector<16x128xf32>,
    %8 = vector.extract_strided_slice %5 {offsets = [0, 128], sizes = [16, 128], strides = [1, 1]} : vector<16x256xf32> to vector<16x128xf32>
    %c0_7 = arith.constant 0 : index
    %c0_8 = arith.constant 0 : index
    %9 = vector.load %arg5[%c0_7, %c0_8] : memref<16x128xf32, #tpu.memory_space<vmem>>, vector<16x128xf32>
    tpu.vector_store %arg5[%c0_7, %c0_8], %8 {strides = array<i32>} : memref<16x128xf32, #tpu.memory_space<vmem>>, vector<16x128xf32>,
    return
  }
  func.func @transform_0(%arg0: i32) -> (i32, i32) {
    %c0_i32 = arith.constant 0 : i32
    %c0_i32_0 = arith.constant 0 : i32
    %c0_i32_1 = arith.constant 0 : i32
    return %c0_i32, %c0_i32_0 : i32, i32
  }
  func.func @transform_1(%arg0: i32) -> (i32, i32) {
    %c0_i32 = arith.constant 0 : i32
    %c0_i32_0 = arith.constant 0 : i32
    %c0_i32_1 = arith.constant 0 : i32
    return %c0_i32, %c0_i32_0 : i32, i32
  }
  func.func @transform_2(%arg0: i32) -> (i32, i32) {
    %c0_i32 = arith.constant 0 : i32
    %c0_i32_0 = arith.constant 0 : i32
    %c0_i32_1 = arith.constant 0 : i32
    return %c0_i32, %c0_i32_0 : i32, i32
  }
  func.func @transform_3(%arg0: i32) -> (i32, i32) {
    %c0_i32 = arith.constant 0 : i32
    %c0_i32_0 = arith.constant 0 : i32
    %c0_i32_1 = arith.constant 0 : i32
    return %c0_i32, %c0_i32_0 : i32, i32
  }
  func.func @transform_4(%arg0: i32) -> (i32, i32) {
    %c0_i32 = arith.constant 0 : i32
    %c0_i32_0 = arith.constant 0 : i32
    %c0_i32_1 = arith.constant 0 : i32
    return %c0_i32, %c0_i32_0 : i32, i32
  }
}

module attributes {stable_mosaic.version = 11 : i64} {
  func.func @embed_kernel(%arg0: i32, %arg1: memref<16x32xf32, #tpu.memory_space<vmem>>, %arg2: memref<16x32xf32, #tpu.memory_space<vmem>>, %arg3: memref<32x16xf32, #tpu.memory_space<vmem>>, %arg4: memref<32x16xf32, #tpu.memory_space<vmem>>, %arg5: memref<1x16xf32, #tpu.memory_space<vmem>>, %arg6: memref<16x16xf32, #tpu.memory_space<vmem>>) attributes {dimension_semantics = [#tpu.dimension_semantics<arbitrary>], iteration_bounds = array<i64: 1>, scalar_prefetch = 0 : i64, scratch_operands = 0 : i64, tpu.core_type = #tpu.core_type<tc>, window_params = [{pipeline_mode = #tpu.pipeline_mode<synchronous>, transform_indices = @transform_0, window_bounds = array<i64: 16, 32>}, {pipeline_mode = #tpu.pipeline_mode<synchronous>, transform_indices = @transform_1, window_bounds = array<i64: 16, 32>}, {pipeline_mode = #tpu.pipeline_mode<synchronous>, transform_indices = @transform_2, window_bounds = array<i64: 32, 16>}, {pipeline_mode = #tpu.pipeline_mode<synchronous>, transform_indices = @transform_3, window_bounds = array<i64: 32, 16>}, {pipeline_mode = #tpu.pipeline_mode<synchronous>, transform_indices = @transform_4, window_bounds = array<i64: 1, 16>}, {pipeline_mode = #tpu.pipeline_mode<synchronous>, transform_indices = @transform_5, window_bounds = array<i64: 16, 16>}]} {
    %c0 = arith.constant 0 : index
    %c0_0 = arith.constant 0 : index
    %0 = vector.load %arg1[%c0, %c0_0] : memref<16x32xf32, #tpu.memory_space<vmem>>, vector<16x32xf32>
    %c0_1 = arith.constant 0 : index
    %c0_2 = arith.constant 0 : index
    %1 = vector.load %arg3[%c0_1, %c0_2] : memref<32x16xf32, #tpu.memory_space<vmem>>, vector<32x16xf32>
    %cst = arith.constant dense<0.000000e+00> : vector<16x16xf32>
    %2 = tpu.matmul %0, %1, %cst {dimension_numbers = #tpu.dot_dimension_numbers<[1], [0], [0], [1], [0, 0, 1, 1], [], []>} : vector<16x32xf32>, vector<32x16xf32>, vector<16x16xf32> -> vector<16x16xf32>
    %c0_3 = arith.constant 0 : index
    %c0_4 = arith.constant 0 : index
    %3 = vector.load %arg2[%c0_3, %c0_4] : memref<16x32xf32, #tpu.memory_space<vmem>>, vector<16x32xf32>
    %c0_5 = arith.constant 0 : index
    %c0_6 = arith.constant 0 : index
    %4 = vector.load %arg4[%c0_5, %c0_6] : memref<32x16xf32, #tpu.memory_space<vmem>>, vector<32x16xf32>
    %cst_7 = arith.constant dense<0.000000e+00> : vector<16x16xf32>
    %5 = tpu.matmul %3, %4, %cst_7 {dimension_numbers = #tpu.dot_dimension_numbers<[1], [0], [0], [1], [0, 0, 1, 1], [], []>} : vector<16x32xf32>, vector<32x16xf32>, vector<16x16xf32> -> vector<16x16xf32>
    %6 = arith.addf %2, %5 : vector<16x16xf32>
    %c0_8 = arith.constant 0 : index
    %c0_9 = arith.constant 0 : index
    %7 = vector.load %arg5[%c0_8, %c0_9] : memref<1x16xf32, #tpu.memory_space<vmem>>, vector<1x16xf32>
    %8 = vector.broadcast %7 : vector<1x16xf32> to vector<16x16xf32>
    %9 = arith.addf %6, %8 : vector<16x16xf32>
    %c0_10 = arith.constant 0 : index
    %c0_11 = arith.constant 0 : index
    %10 = vector.load %arg6[%c0_10, %c0_11] : memref<16x16xf32, #tpu.memory_space<vmem>>, vector<16x16xf32>
    tpu.vector_store %arg6[%c0_10, %c0_11], %9 {strides = array<i32>} : memref<16x16xf32, #tpu.memory_space<vmem>>, vector<16x16xf32>,
    return
  }
  func.func @transform_0(%arg0: i32) -> (i32, i32) {
    %c0_i32 = arith.constant 0 : i32
    %c0_i32_0 = arith.constant 0 : i32
    %c0_i32_1 = arith.constant 0 : i32
    return %c0_i32, %c0_i32_0 : i32, i32
  }
  func.func @transform_1(%arg0: i32) -> (i32, i32) {
    %c0_i32 = arith.constant 0 : i32
    %c0_i32_0 = arith.constant 0 : i32
    %c0_i32_1 = arith.constant 0 : i32
    return %c0_i32, %c0_i32_0 : i32, i32
  }
  func.func @transform_2(%arg0: i32) -> (i32, i32) {
    %c0_i32 = arith.constant 0 : i32
    %c0_i32_0 = arith.constant 0 : i32
    %c0_i32_1 = arith.constant 0 : i32
    return %c0_i32, %c0_i32_0 : i32, i32
  }
  func.func @transform_3(%arg0: i32) -> (i32, i32) {
    %c0_i32 = arith.constant 0 : i32
    %c0_i32_0 = arith.constant 0 : i32
    %c0_i32_1 = arith.constant 0 : i32
    return %c0_i32, %c0_i32_0 : i32, i32
  }
  func.func @transform_4(%arg0: i32) -> (i32, i32) {
    %c0_i32 = arith.constant 0 : i32
    %c0_i32_0 = arith.constant 0 : i32
    %c0_i32_1 = arith.constant 0 : i32
    return %c0_i32, %c0_i32_0 : i32, i32
  }
  func.func @transform_5(%arg0: i32) -> (i32, i32) {
    %c0_i32 = arith.constant 0 : i32
    %c0_i32_0 = arith.constant 0 : i32
    %c0_i32_1 = arith.constant 0 : i32
    return %c0_i32, %c0_i32_0 : i32, i32
  }
}

module attributes {stable_mosaic.version = 11 : i64} {
  func.func @lstm_kernel(%arg0: i32, %arg1: memref<4x2x128xf32, #tpu.memory_space<vmem>>, %arg2: memref<4x2x128xf32, #tpu.memory_space<vmem>>, %arg3: memref<32x256xf32, #tpu.memory_space<vmem>>, %arg4: memref<4x2x32xf32, #tpu.memory_space<vmem>>, %arg5: memref<4x2x32xf32, #tpu.memory_space<vmem>>, %arg6: memref<4x32xf32, #tpu.memory_space<vmem>>, %arg7: memref<4x32xf32, #tpu.memory_space<vmem>>) attributes {dimension_semantics = [#tpu.dimension_semantics<arbitrary>], iteration_bounds = array<i64: 2>, scalar_prefetch = 0 : i64, scratch_operands = 2 : i64, tpu.core_type = #tpu.core_type<tc>, window_params = [{transform_indices = @transform_0, window_bounds = array<i64: 4, 2, 128>}, {transform_indices = @transform_1, window_bounds = array<i64: 4, 2, 128>}, {pipeline_mode = #tpu.pipeline_mode<synchronous>, transform_indices = @transform_2, window_bounds = array<i64: 32, 256>}, {transform_indices = @transform_3, window_bounds = array<i64: 4, 2, 32>}, {transform_indices = @transform_4, window_bounds = array<i64: 4, 2, 32>}]} {
    %c0_i32 = arith.constant 0 : i32
    %0 = arith.cmpi eq, %arg0, %c0_i32 : i32
    %1 = arith.extui %0 : i1 to i32
    %c0_i32_0 = arith.constant 0 : i32
    %2 = arith.cmpi ne, %1, %c0_i32_0 : i32
    scf.if %2 {
      %cst_72 = arith.constant 0.000000e+00 : f32
      %207 = vector.broadcast %cst_72 : f32 to vector<4x32xf32>
      %c0_73 = arith.constant 0 : index
      %c0_74 = arith.constant 0 : index
      %208 = vector.load %arg6[%c0_73, %c0_74] : memref<4x32xf32, #tpu.memory_space<vmem>>, vector<4x32xf32>
      tpu.vector_store %arg6[%c0_73, %c0_74], %207 {strides = array<i32>} : memref<4x32xf32, #tpu.memory_space<vmem>>, vector<4x32xf32>,
      %cst_75 = arith.constant 0.000000e+00 : f32
      %209 = vector.broadcast %cst_75 : f32 to vector<4x32xf32>
      %c0_76 = arith.constant 0 : index
      %c0_77 = arith.constant 0 : index
      %210 = vector.load %arg7[%c0_76, %c0_77] : memref<4x32xf32, #tpu.memory_space<vmem>>, vector<4x32xf32>
      tpu.vector_store %arg7[%c0_76, %c0_77], %209 {strides = array<i32>} : memref<4x32xf32, #tpu.memory_space<vmem>>, vector<4x32xf32>,
    } else {
    }
    %c0 = arith.constant 0 : index
    %c0_1 = arith.constant 0 : index
    %3 = vector.load %arg6[%c0, %c0_1] : memref<4x32xf32, #tpu.memory_space<vmem>>, vector<4x32xf32>
    %c0_2 = arith.constant 0 : index
    %c0_3 = arith.constant 0 : index
    %4 = vector.load %arg7[%c0_2, %c0_3] : memref<4x32xf32, #tpu.memory_space<vmem>>, vector<4x32xf32>
    %c0_i32_4 = arith.constant 0 : i32
    %c0_5 = arith.constant 0 : index
    %c0_6 = arith.constant 0 : index
    %5 = vector.load %arg3[%c0_5, %c0_6] : memref<32x256xf32, #tpu.memory_space<vmem>>, vector<32x256xf32>
    %cst = arith.constant dense<0.000000e+00> : vector<4x256xf32>
    %6 = tpu.matmul %3, %5, %cst {dimension_numbers = #tpu.dot_dimension_numbers<[1], [0], [0], [1], [0, 0, 1, 1], [], []>} : vector<4x32xf32>, vector<32x256xf32>, vector<4x256xf32> -> vector<4x256xf32>
    %7 = arith.index_cast %c0_i32_4 : i32 to index
    %c0_7 = arith.constant 0 : index
    %c0_8 = arith.constant 0 : index
    %8 = vector.load %arg1[%7, %c0_7, %c0_8] : memref<4x2x128xf32, #tpu.memory_space<vmem>>, vector<1x2x128xf32>
    %9 = vector.shape_cast %8 : vector<1x2x128xf32> to vector<2x128xf32>
    %10 = vector.extract_strided_slice %6 {offsets = [0, 0], sizes = [2, 128], strides = [1, 1]} : vector<4x256xf32> to vector<2x128xf32>
    %11 = arith.addf %9, %10 : vector<2x128xf32>
    %c3_i32 = arith.constant 3 : i32
    %12 = arith.subi %c3_i32, %c0_i32_4 : i32
    %13 = arith.index_cast %12 : i32 to index
    %c0_9 = arith.constant 0 : index
    %c0_10 = arith.constant 0 : index
    %14 = vector.load %arg2[%13, %c0_9, %c0_10] : memref<4x2x128xf32, #tpu.memory_space<vmem>>, vector<1x2x128xf32>
    %15 = vector.shape_cast %14 : vector<1x2x128xf32> to vector<2x128xf32>
    %16 = vector.extract_strided_slice %6 {offsets = [2, 128], sizes = [2, 128], strides = [1, 1]} : vector<4x256xf32> to vector<2x128xf32>
    %17 = arith.addf %15, %16 : vector<2x128xf32>
    %18 = tpu.concatenate %11, %17 in 0 : vector<2x128xf32>, vector<2x128xf32> -> vector<4x128xf32>
    %19 = vector.extract_strided_slice %18 {offsets = [0, 0], sizes = [4, 32], strides = [1, 1]} : vector<4x128xf32> to vector<4x32xf32>
    %20 = arith.negf %19 : vector<4x32xf32>
    %21 = math.exp %20 : vector<4x32xf32>
    %cst_11 = arith.constant 1.000000e+00 : f32
    %22 = vector.broadcast %cst_11 : f32 to vector<4x32xf32>
    %23 = arith.addf %22, %21 : vector<4x32xf32>
    %24 = arith.divf %22, %23 : vector<4x32xf32>
    %25 = vector.extract_strided_slice %18 {offsets = [0, 32], sizes = [4, 32], strides = [1, 1]} : vector<4x128xf32> to vector<4x32xf32>
    %26 = arith.negf %25 : vector<4x32xf32>
    %27 = math.exp %26 : vector<4x32xf32>
    %cst_12 = arith.constant 1.000000e+00 : f32
    %28 = vector.broadcast %cst_12 : f32 to vector<4x32xf32>
    %29 = arith.addf %28, %27 : vector<4x32xf32>
    %30 = arith.divf %28, %29 : vector<4x32xf32>
    %31 = vector.extract_strided_slice %18 {offsets = [0, 64], sizes = [4, 32], strides = [1, 1]} : vector<4x128xf32> to vector<4x32xf32>
    %32 = math.tanh %31 : vector<4x32xf32>
    %33 = vector.extract_strided_slice %18 {offsets = [0, 96], sizes = [4, 32], strides = [1, 1]} : vector<4x128xf32> to vector<4x32xf32>
    %34 = arith.negf %33 : vector<4x32xf32>
    %35 = math.exp %34 : vector<4x32xf32>
    %cst_13 = arith.constant 1.000000e+00 : f32
    %36 = vector.broadcast %cst_13 : f32 to vector<4x32xf32>
    %37 = arith.addf %36, %35 : vector<4x32xf32>
    %38 = arith.divf %36, %37 : vector<4x32xf32>
    %39 = arith.mulf %30, %4 : vector<4x32xf32>
    %40 = arith.mulf %24, %32 : vector<4x32xf32>
    %41 = arith.addf %39, %40 : vector<4x32xf32>
    %42 = math.tanh %41 : vector<4x32xf32>
    %43 = arith.mulf %38, %42 : vector<4x32xf32>
    %44 = vector.extract_strided_slice %43 {offsets = [0, 0], sizes = [2, 32], strides = [1, 1]} : vector<4x32xf32> to vector<2x32xf32>
    %45 = arith.index_cast %c0_i32_4 : i32 to index
    %c0_14 = arith.constant 0 : index
    %c0_15 = arith.constant 0 : index
    %46 = vector.load %arg4[%45, %c0_14, %c0_15] : memref<4x2x32xf32, #tpu.memory_space<vmem>>, vector<1x2x32xf32>
    %47 = vector.shape_cast %46 : vector<1x2x32xf32> to vector<2x32xf32>
    %48 = vector.shape_cast %44 : vector<2x32xf32> to vector<1x2x32xf32>
    tpu.vector_store %arg4[%45, %c0_14, %c0_15], %48 {strides = array<i32>} : memref<4x2x32xf32, #tpu.memory_space<vmem>>, vector<1x2x32xf32>,
    %49 = vector.extract_strided_slice %43 {offsets = [2, 0], sizes = [2, 32], strides = [1, 1]} : vector<4x32xf32> to vector<2x32xf32>
    %c3_i32_16 = arith.constant 3 : i32
    %50 = arith.subi %c3_i32_16, %c0_i32_4 : i32
    %51 = arith.index_cast %50 : i32 to index
    %c0_17 = arith.constant 0 : index
    %c0_18 = arith.constant 0 : index
    %52 = vector.load %arg5[%51, %c0_17, %c0_18] : memref<4x2x32xf32, #tpu.memory_space<vmem>>, vector<1x2x32xf32>
    %53 = vector.shape_cast %52 : vector<1x2x32xf32> to vector<2x32xf32>
    %54 = vector.shape_cast %49 : vector<2x32xf32> to vector<1x2x32xf32>
    tpu.vector_store %arg5[%51, %c0_17, %c0_18], %54 {strides = array<i32>} : memref<4x2x32xf32, #tpu.memory_space<vmem>>, vector<1x2x32xf32>,
    %c1_i32 = arith.constant 1 : i32
    %c0_19 = arith.constant 0 : index
    %c0_20 = arith.constant 0 : index
    %55 = vector.load %arg3[%c0_19, %c0_20] : memref<32x256xf32, #tpu.memory_space<vmem>>, vector<32x256xf32>
    %cst_21 = arith.constant dense<0.000000e+00> : vector<4x256xf32>
    %56 = tpu.matmul %43, %55, %cst_21 {dimension_numbers = #tpu.dot_dimension_numbers<[1], [0], [0], [1], [0, 0, 1, 1], [], []>} : vector<4x32xf32>, vector<32x256xf32>, vector<4x256xf32> -> vector<4x256xf32>
    %57 = arith.index_cast %c1_i32 : i32 to index
    %c0_22 = arith.constant 0 : index
    %c0_23 = arith.constant 0 : index
    %58 = vector.load %arg1[%57, %c0_22, %c0_23] : memref<4x2x128xf32, #tpu.memory_space<vmem>>, vector<1x2x128xf32>
    %59 = vector.shape_cast %58 : vector<1x2x128xf32> to vector<2x128xf32>
    %60 = vector.extract_strided_slice %56 {offsets = [0, 0], sizes = [2, 128], strides = [1, 1]} : vector<4x256xf32> to vector<2x128xf32>
    %61 = arith.addf %59, %60 : vector<2x128xf32>
    %c3_i32_24 = arith.constant 3 : i32
    %62 = arith.subi %c3_i32_24, %c1_i32 : i32
    %63 = arith.index_cast %62 : i32 to index
    %c0_25 = arith.constant 0 : index
    %c0_26 = arith.constant 0 : index
    %64 = vector.load %arg2[%63, %c0_25, %c0_26] : memref<4x2x128xf32, #tpu.memory_space<vmem>>, vector<1x2x128xf32>
    %65 = vector.shape_cast %64 : vector<1x2x128xf32> to vector<2x128xf32>
    %66 = vector.extract_strided_slice %56 {offsets = [2, 128], sizes = [2, 128], strides = [1, 1]} : vector<4x256xf32> to vector<2x128xf32>
    %67 = arith.addf %65, %66 : vector<2x128xf32>
    %68 = tpu.concatenate %61, %67 in 0 : vector<2x128xf32>, vector<2x128xf32> -> vector<4x128xf32>
    %69 = vector.extract_strided_slice %68 {offsets = [0, 0], sizes = [4, 32], strides = [1, 1]} : vector<4x128xf32> to vector<4x32xf32>
    %70 = arith.negf %69 : vector<4x32xf32>
    %71 = math.exp %70 : vector<4x32xf32>
    %cst_27 = arith.constant 1.000000e+00 : f32
    %72 = vector.broadcast %cst_27 : f32 to vector<4x32xf32>
    %73 = arith.addf %72, %71 : vector<4x32xf32>
    %74 = arith.divf %72, %73 : vector<4x32xf32>
    %75 = vector.extract_strided_slice %68 {offsets = [0, 32], sizes = [4, 32], strides = [1, 1]} : vector<4x128xf32> to vector<4x32xf32>
    %76 = arith.negf %75 : vector<4x32xf32>
    %77 = math.exp %76 : vector<4x32xf32>
    %cst_28 = arith.constant 1.000000e+00 : f32
    %78 = vector.broadcast %cst_28 : f32 to vector<4x32xf32>
    %79 = arith.addf %78, %77 : vector<4x32xf32>
    %80 = arith.divf %78, %79 : vector<4x32xf32>
    %81 = vector.extract_strided_slice %68 {offsets = [0, 64], sizes = [4, 32], strides = [1, 1]} : vector<4x128xf32> to vector<4x32xf32>
    %82 = math.tanh %81 : vector<4x32xf32>
    %83 = vector.extract_strided_slice %68 {offsets = [0, 96], sizes = [4, 32], strides = [1, 1]} : vector<4x128xf32> to vector<4x32xf32>
    %84 = arith.negf %83 : vector<4x32xf32>
    %85 = math.exp %84 : vector<4x32xf32>
    %cst_29 = arith.constant 1.000000e+00 : f32
    %86 = vector.broadcast %cst_29 : f32 to vector<4x32xf32>
    %87 = arith.addf %86, %85 : vector<4x32xf32>
    %88 = arith.divf %86, %87 : vector<4x32xf32>
    %89 = arith.mulf %80, %41 : vector<4x32xf32>
    %90 = arith.mulf %74, %82 : vector<4x32xf32>
    %91 = arith.addf %89, %90 : vector<4x32xf32>
    %92 = math.tanh %91 : vector<4x32xf32>
    %93 = arith.mulf %88, %92 : vector<4x32xf32>
    %94 = vector.extract_strided_slice %93 {offsets = [0, 0], sizes = [2, 32], strides = [1, 1]} : vector<4x32xf32> to vector<2x32xf32>
    %95 = arith.index_cast %c1_i32 : i32 to index
    %c0_30 = arith.constant 0 : index
    %c0_31 = arith.constant 0 : index
    %96 = vector.load %arg4[%95, %c0_30, %c0_31] : memref<4x2x32xf32, #tpu.memory_space<vmem>>, vector<1x2x32xf32>
    %97 = vector.shape_cast %96 : vector<1x2x32xf32> to vector<2x32xf32>
    %98 = vector.shape_cast %94 : vector<2x32xf32> to vector<1x2x32xf32>
    tpu.vector_store %arg4[%95, %c0_30, %c0_31], %98 {strides = array<i32>} : memref<4x2x32xf32, #tpu.memory_space<vmem>>, vector<1x2x32xf32>,
    %99 = vector.extract_strided_slice %93 {offsets = [2, 0], sizes = [2, 32], strides = [1, 1]} : vector<4x32xf32> to vector<2x32xf32>
    %c3_i32_32 = arith.constant 3 : i32
    %100 = arith.subi %c3_i32_32, %c1_i32 : i32
    %101 = arith.index_cast %100 : i32 to index
    %c0_33 = arith.constant 0 : index
    %c0_34 = arith.constant 0 : index
    %102 = vector.load %arg5[%101, %c0_33, %c0_34] : memref<4x2x32xf32, #tpu.memory_space<vmem>>, vector<1x2x32xf32>
    %103 = vector.shape_cast %102 : vector<1x2x32xf32> to vector<2x32xf32>
    %104 = vector.shape_cast %99 : vector<2x32xf32> to vector<1x2x32xf32>
    tpu.vector_store %arg5[%101, %c0_33, %c0_34], %104 {strides = array<i32>} : memref<4x2x32xf32, #tpu.memory_space<vmem>>, vector<1x2x32xf32>,
    %c2_i32 = arith.constant 2 : i32
    %c0_35 = arith.constant 0 : index
    %c0_36 = arith.constant 0 : index
    %105 = vector.load %arg3[%c0_35, %c0_36] : memref<32x256xf32, #tpu.memory_space<vmem>>, vector<32x256xf32>
    %cst_37 = arith.constant dense<0.000000e+00> : vector<4x256xf32>
    %106 = tpu.matmul %93, %105, %cst_37 {dimension_numbers = #tpu.dot_dimension_numbers<[1], [0], [0], [1], [0, 0, 1, 1], [], []>} : vector<4x32xf32>, vector<32x256xf32>, vector<4x256xf32> -> vector<4x256xf32>
    %107 = arith.index_cast %c2_i32 : i32 to index
    %c0_38 = arith.constant 0 : index
    %c0_39 = arith.constant 0 : index
    %108 = vector.load %arg1[%107, %c0_38, %c0_39] : memref<4x2x128xf32, #tpu.memory_space<vmem>>, vector<1x2x128xf32>
    %109 = vector.shape_cast %108 : vector<1x2x128xf32> to vector<2x128xf32>
    %110 = vector.extract_strided_slice %106 {offsets = [0, 0], sizes = [2, 128], strides = [1, 1]} : vector<4x256xf32> to vector<2x128xf32>
    %111 = arith.addf %109, %110 : vector<2x128xf32>
    %c3_i32_40 = arith.constant 3 : i32
    %112 = arith.subi %c3_i32_40, %c2_i32 : i32
    %113 = arith.index_cast %112 : i32 to index
    %c0_41 = arith.constant 0 : index
    %c0_42 = arith.constant 0 : index
    %114 = vector.load %arg2[%113, %c0_41, %c0_42] : memref<4x2x128xf32, #tpu.memory_space<vmem>>, vector<1x2x128xf32>
    %115 = vector.shape_cast %114 : vector<1x2x128xf32> to vector<2x128xf32>
    %116 = vector.extract_strided_slice %106 {offsets = [2, 128], sizes = [2, 128], strides = [1, 1]} : vector<4x256xf32> to vector<2x128xf32>
    %117 = arith.addf %115, %116 : vector<2x128xf32>
    %118 = tpu.concatenate %111, %117 in 0 : vector<2x128xf32>, vector<2x128xf32> -> vector<4x128xf32>
    %119 = vector.extract_strided_slice %118 {offsets = [0, 0], sizes = [4, 32], strides = [1, 1]} : vector<4x128xf32> to vector<4x32xf32>
    %120 = arith.negf %119 : vector<4x32xf32>
    %121 = math.exp %120 : vector<4x32xf32>
    %cst_43 = arith.constant 1.000000e+00 : f32
    %122 = vector.broadcast %cst_43 : f32 to vector<4x32xf32>
    %123 = arith.addf %122, %121 : vector<4x32xf32>
    %124 = arith.divf %122, %123 : vector<4x32xf32>
    %125 = vector.extract_strided_slice %118 {offsets = [0, 32], sizes = [4, 32], strides = [1, 1]} : vector<4x128xf32> to vector<4x32xf32>
    %126 = arith.negf %125 : vector<4x32xf32>
    %127 = math.exp %126 : vector<4x32xf32>
    %cst_44 = arith.constant 1.000000e+00 : f32
    %128 = vector.broadcast %cst_44 : f32 to vector<4x32xf32>
    %129 = arith.addf %128, %127 : vector<4x32xf32>
    %130 = arith.divf %128, %129 : vector<4x32xf32>
    %131 = vector.extract_strided_slice %118 {offsets = [0, 64], sizes = [4, 32], strides = [1, 1]} : vector<4x128xf32> to vector<4x32xf32>
    %132 = math.tanh %131 : vector<4x32xf32>
    %133 = vector.extract_strided_slice %118 {offsets = [0, 96], sizes = [4, 32], strides = [1, 1]} : vector<4x128xf32> to vector<4x32xf32>
    %134 = arith.negf %133 : vector<4x32xf32>
    %135 = math.exp %134 : vector<4x32xf32>
    %cst_45 = arith.constant 1.000000e+00 : f32
    %136 = vector.broadcast %cst_45 : f32 to vector<4x32xf32>
    %137 = arith.addf %136, %135 : vector<4x32xf32>
    %138 = arith.divf %136, %137 : vector<4x32xf32>
    %139 = arith.mulf %130, %91 : vector<4x32xf32>
    %140 = arith.mulf %124, %132 : vector<4x32xf32>
    %141 = arith.addf %139, %140 : vector<4x32xf32>
    %142 = math.tanh %141 : vector<4x32xf32>
    %143 = arith.mulf %138, %142 : vector<4x32xf32>
    %144 = vector.extract_strided_slice %143 {offsets = [0, 0], sizes = [2, 32], strides = [1, 1]} : vector<4x32xf32> to vector<2x32xf32>
    %145 = arith.index_cast %c2_i32 : i32 to index
    %c0_46 = arith.constant 0 : index
    %c0_47 = arith.constant 0 : index
    %146 = vector.load %arg4[%145, %c0_46, %c0_47] : memref<4x2x32xf32, #tpu.memory_space<vmem>>, vector<1x2x32xf32>
    %147 = vector.shape_cast %146 : vector<1x2x32xf32> to vector<2x32xf32>
    %148 = vector.shape_cast %144 : vector<2x32xf32> to vector<1x2x32xf32>
    tpu.vector_store %arg4[%145, %c0_46, %c0_47], %148 {strides = array<i32>} : memref<4x2x32xf32, #tpu.memory_space<vmem>>, vector<1x2x32xf32>,
    %149 = vector.extract_strided_slice %143 {offsets = [2, 0], sizes = [2, 32], strides = [1, 1]} : vector<4x32xf32> to vector<2x32xf32>
    %c3_i32_48 = arith.constant 3 : i32
    %150 = arith.subi %c3_i32_48, %c2_i32 : i32
    %151 = arith.index_cast %150 : i32 to index
    %c0_49 = arith.constant 0 : index
    %c0_50 = arith.constant 0 : index
    %152 = vector.load %arg5[%151, %c0_49, %c0_50] : memref<4x2x32xf32, #tpu.memory_space<vmem>>, vector<1x2x32xf32>
    %153 = vector.shape_cast %152 : vector<1x2x32xf32> to vector<2x32xf32>
    %154 = vector.shape_cast %149 : vector<2x32xf32> to vector<1x2x32xf32>
    tpu.vector_store %arg5[%151, %c0_49, %c0_50], %154 {strides = array<i32>} : memref<4x2x32xf32, #tpu.memory_space<vmem>>, vector<1x2x32xf32>,
    %c3_i32_51 = arith.constant 3 : i32
    %c0_52 = arith.constant 0 : index
    %c0_53 = arith.constant 0 : index
    %155 = vector.load %arg3[%c0_52, %c0_53] : memref<32x256xf32, #tpu.memory_space<vmem>>, vector<32x256xf32>
    %cst_54 = arith.constant dense<0.000000e+00> : vector<4x256xf32>
    %156 = tpu.matmul %143, %155, %cst_54 {dimension_numbers = #tpu.dot_dimension_numbers<[1], [0], [0], [1], [0, 0, 1, 1], [], []>} : vector<4x32xf32>, vector<32x256xf32>, vector<4x256xf32> -> vector<4x256xf32>
    %157 = arith.index_cast %c3_i32_51 : i32 to index
    %c0_55 = arith.constant 0 : index
    %c0_56 = arith.constant 0 : index
    %158 = vector.load %arg1[%157, %c0_55, %c0_56] : memref<4x2x128xf32, #tpu.memory_space<vmem>>, vector<1x2x128xf32>
    %159 = vector.shape_cast %158 : vector<1x2x128xf32> to vector<2x128xf32>
    %160 = vector.extract_strided_slice %156 {offsets = [0, 0], sizes = [2, 128], strides = [1, 1]} : vector<4x256xf32> to vector<2x128xf32>
    %161 = arith.addf %159, %160 : vector<2x128xf32>
    %c3_i32_57 = arith.constant 3 : i32
    %162 = arith.subi %c3_i32_57, %c3_i32_51 : i32
    %163 = arith.index_cast %162 : i32 to index
    %c0_58 = arith.constant 0 : index
    %c0_59 = arith.constant 0 : index
    %164 = vector.load %arg2[%163, %c0_58, %c0_59] : memref<4x2x128xf32, #tpu.memory_space<vmem>>, vector<1x2x128xf32>
    %165 = vector.shape_cast %164 : vector<1x2x128xf32> to vector<2x128xf32>
    %166 = vector.extract_strided_slice %156 {offsets = [2, 128], sizes = [2, 128], strides = [1, 1]} : vector<4x256xf32> to vector<2x128xf32>
    %167 = arith.addf %165, %166 : vector<2x128xf32>
    %168 = tpu.concatenate %161, %167 in 0 : vector<2x128xf32>, vector<2x128xf32> -> vector<4x128xf32>
    %169 = vector.extract_strided_slice %168 {offsets = [0, 0], sizes = [4, 32], strides = [1, 1]} : vector<4x128xf32> to vector<4x32xf32>
    %170 = arith.negf %169 : vector<4x32xf32>
    %171 = math.exp %170 : vector<4x32xf32>
    %cst_60 = arith.constant 1.000000e+00 : f32
    %172 = vector.broadcast %cst_60 : f32 to vector<4x32xf32>
    %173 = arith.addf %172, %171 : vector<4x32xf32>
    %174 = arith.divf %172, %173 : vector<4x32xf32>
    %175 = vector.extract_strided_slice %168 {offsets = [0, 32], sizes = [4, 32], strides = [1, 1]} : vector<4x128xf32> to vector<4x32xf32>
    %176 = arith.negf %175 : vector<4x32xf32>
    %177 = math.exp %176 : vector<4x32xf32>
    %cst_61 = arith.constant 1.000000e+00 : f32
    %178 = vector.broadcast %cst_61 : f32 to vector<4x32xf32>
    %179 = arith.addf %178, %177 : vector<4x32xf32>
    %180 = arith.divf %178, %179 : vector<4x32xf32>
    %181 = vector.extract_strided_slice %168 {offsets = [0, 64], sizes = [4, 32], strides = [1, 1]} : vector<4x128xf32> to vector<4x32xf32>
    %182 = math.tanh %181 : vector<4x32xf32>
    %183 = vector.extract_strided_slice %168 {offsets = [0, 96], sizes = [4, 32], strides = [1, 1]} : vector<4x128xf32> to vector<4x32xf32>
    %184 = arith.negf %183 : vector<4x32xf32>
    %185 = math.exp %184 : vector<4x32xf32>
    %cst_62 = arith.constant 1.000000e+00 : f32
    %186 = vector.broadcast %cst_62 : f32 to vector<4x32xf32>
    %187 = arith.addf %186, %185 : vector<4x32xf32>
    %188 = arith.divf %186, %187 : vector<4x32xf32>
    %189 = arith.mulf %180, %141 : vector<4x32xf32>
    %190 = arith.mulf %174, %182 : vector<4x32xf32>
    %191 = arith.addf %189, %190 : vector<4x32xf32>
    %192 = math.tanh %191 : vector<4x32xf32>
    %193 = arith.mulf %188, %192 : vector<4x32xf32>
    %194 = vector.extract_strided_slice %193 {offsets = [0, 0], sizes = [2, 32], strides = [1, 1]} : vector<4x32xf32> to vector<2x32xf32>
    %195 = arith.index_cast %c3_i32_51 : i32 to index
    %c0_63 = arith.constant 0 : index
    %c0_64 = arith.constant 0 : index
    %196 = vector.load %arg4[%195, %c0_63, %c0_64] : memref<4x2x32xf32, #tpu.memory_space<vmem>>, vector<1x2x32xf32>
    %197 = vector.shape_cast %196 : vector<1x2x32xf32> to vector<2x32xf32>
    %198 = vector.shape_cast %194 : vector<2x32xf32> to vector<1x2x32xf32>
    tpu.vector_store %arg4[%195, %c0_63, %c0_64], %198 {strides = array<i32>} : memref<4x2x32xf32, #tpu.memory_space<vmem>>, vector<1x2x32xf32>,
    %199 = vector.extract_strided_slice %193 {offsets = [2, 0], sizes = [2, 32], strides = [1, 1]} : vector<4x32xf32> to vector<2x32xf32>
    %c3_i32_65 = arith.constant 3 : i32
    %200 = arith.subi %c3_i32_65, %c3_i32_51 : i32
    %201 = arith.index_cast %200 : i32 to index
    %c0_66 = arith.constant 0 : index
    %c0_67 = arith.constant 0 : index
    %202 = vector.load %arg5[%201, %c0_66, %c0_67] : memref<4x2x32xf32, #tpu.memory_space<vmem>>, vector<1x2x32xf32>
    %203 = vector.shape_cast %202 : vector<1x2x32xf32> to vector<2x32xf32>
    %204 = vector.shape_cast %199 : vector<2x32xf32> to vector<1x2x32xf32>
    tpu.vector_store %arg5[%201, %c0_66, %c0_67], %204 {strides = array<i32>} : memref<4x2x32xf32, #tpu.memory_space<vmem>>, vector<1x2x32xf32>,
    %c4_i32 = arith.constant 4 : i32
    %c0_68 = arith.constant 0 : index
    %c0_69 = arith.constant 0 : index
    %205 = vector.load %arg6[%c0_68, %c0_69] : memref<4x32xf32, #tpu.memory_space<vmem>>, vector<4x32xf32>
    tpu.vector_store %arg6[%c0_68, %c0_69], %193 {strides = array<i32>} : memref<4x32xf32, #tpu.memory_space<vmem>>, vector<4x32xf32>,
    %c0_70 = arith.constant 0 : index
    %c0_71 = arith.constant 0 : index
    %206 = vector.load %arg7[%c0_70, %c0_71] : memref<4x32xf32, #tpu.memory_space<vmem>>, vector<4x32xf32>
    tpu.vector_store %arg7[%c0_70, %c0_71], %191 {strides = array<i32>} : memref<4x32xf32, #tpu.memory_space<vmem>>, vector<4x32xf32>,
    return
  }
  func.func @transform_0(%arg0: i32) -> (i32, i32, i32) {
    %c0_i32 = arith.constant 0 : i32
    %c0_i32_0 = arith.constant 0 : i32
    %c0_i32_1 = arith.constant 0 : i32
    return %arg0, %c0_i32, %c0_i32_0 : i32, i32, i32
  }
  func.func @transform_1(%arg0: i32) -> (i32, i32, i32) {
    %c1_i32 = arith.constant 1 : i32
    %0 = arith.subi %c1_i32, %arg0 : i32
    %c0_i32 = arith.constant 0 : i32
    %c0_i32_0 = arith.constant 0 : i32
    %c0_i32_1 = arith.constant 0 : i32
    return %0, %c0_i32, %c0_i32_0 : i32, i32, i32
  }
  func.func @transform_2(%arg0: i32) -> (i32, i32) {
    %c0_i32 = arith.constant 0 : i32
    %c0_i32_0 = arith.constant 0 : i32
    %c0_i32_1 = arith.constant 0 : i32
    return %c0_i32, %c0_i32_0 : i32, i32
  }
  func.func @transform_3(%arg0: i32) -> (i32, i32, i32) {
    %c0_i32 = arith.constant 0 : i32
    %c0_i32_0 = arith.constant 0 : i32
    %c0_i32_1 = arith.constant 0 : i32
    return %arg0, %c0_i32, %c0_i32_0 : i32, i32, i32
  }
  func.func @transform_4(%arg0: i32) -> (i32, i32, i32) {
    %c1_i32 = arith.constant 1 : i32
    %0 = arith.subi %c1_i32, %arg0 : i32
    %c0_i32 = arith.constant 0 : i32
    %c0_i32_0 = arith.constant 0 : i32
    %c0_i32_1 = arith.constant 0 : i32
    return %0, %c0_i32, %c0_i32_0 : i32, i32, i32
  }
}

</mosaic_0001>

<llo_original>
// kernel: bidirectional_lstm.5
$region0: #{bidirectional_lstm.5}
  #allocation0 [shape = 'u32[]', space=smem, size = 0x4, offset = 0x4, fixed_abs, tag = 'smem constant byte address 0x4 - core index']
  #allocation1 [shape = 'u32[72,128]{1,0:T(1,128)}', space=vmem, size = 0x9000, scoped, tag = 'internal scratch']
  %s0 = inlined_call_operand.vmem [shape: f32[16,32], index: 0, kind: input, shape index: {}]
  %s1 = inlined_call_operand.vmem [shape: f32[16,32], index: 1, kind: input, shape index: {}]
  %s2 = inlined_call_operand.vmem [shape: f32[32,16], index: 2, kind: input, shape index: {}]
  %s3 = inlined_call_operand.vmem [shape: f32[32,16], index: 3, kind: input, shape index: {}]
  %s4 = inlined_call_operand.vmem [shape: f32[1,16], index: 4, kind: input, shape index: {}]
  %s5 = inlined_call_operand.hbm [shape: f32[16,16], index: 5, kind: output, shape index: {}]
  %s6 = sld [smem:[#allocation0]]
  $region30: #{bidirectional_lstm.5} parent=0
    _
  %s8 = ssub.s32 1, %s6
  %s9 = scalar_select 0, %s8, %s6
  $region1: #{bidirectional_lstm.5} parent=0
    #allocation2 [shape = 'u8[8192]{0}', space=vmem, size = 0x2000, scoped, tag = 'output window, operand 0, single buffered']
    #allocation3 [shape = 's32[1]{0}', space=sflag, size = 0x4, scoped, tag = 'scoped memory for bidirectional_lstm.5']
    %10 = vsyncpa [#allocation3], 0
    // Predicated region
    $region2: #{bidirectional_lstm.5} parent=1 // pred_check
      _
    $region3: #{bidirectional_lstm.5} parent=1 // pred_check_branch
      %12 = sbr.rel (0) target = $region5
    $region4: #{bidirectional_lstm.5} parent=1 // pred_region
      _
    $region5: #{bidirectional_lstm.5} parent=1 // pred_fallthru
      _
    // Predicated region
    $region6: #{bidirectional_lstm.5} parent=1 // pred_check
      _
    $region7: #{bidirectional_lstm.5} parent=1 // pred_check_branch
      %14 = sbr.rel (0) target = $region9
    $region8: #{bidirectional_lstm.5} parent=1 // pred_region
      _
    $region9: #{bidirectional_lstm.5} parent=1 // pred_fallthru
      _
    // Predicated region
    $region10: #{bidirectional_lstm.5} parent=1 // pred_check
      _
    $region11: #{bidirectional_lstm.5} parent=1 // pred_check_branch
      %16 = sbr.rel (0) target = $region13
    $region12: #{bidirectional_lstm.5} parent=1 // pred_region
      _
    $region13: #{bidirectional_lstm.5} parent=1 // pred_fallthru
      _
    // Predicated region
    $region14: #{bidirectional_lstm.5} parent=1 // pred_check
      _
    $region15: #{bidirectional_lstm.5} parent=1 // pred_check_branch
      %18 = sbr.rel (0) target = $region17
    $region16: #{bidirectional_lstm.5} parent=1 // pred_region
      _
    $region17: #{bidirectional_lstm.5} parent=1 // pred_fallthru
      _
    // Predicated region
    $region18: #{bidirectional_lstm.5} parent=1 // pred_check
      _
    $region19: #{bidirectional_lstm.5} parent=1 // pred_check_branch
      %20 = sbr.rel (0) target = $region21
    $region20: #{bidirectional_lstm.5} parent=1 // pred_region
      _
    $region21: #{bidirectional_lstm.5} parent=1 // pred_fallthru
      _
    %v21 = vld [vmem:[%s0] sm:$0xff]
    %v22 = vld [vmem:[%s0 + $0x8] sm:$0xff]
    %v23 = vld [vmem:[%s2] sm:$0xff]
    %v24 = vld [vmem:[%s2 + $0x8] sm:$0xff]
    %v25 = vld [vmem:[%s2 + $0x10] sm:$0xff]
    %v26 = vld [vmem:[%s2 + $0x18] sm:$0xff]
    %v27 = vld [vmem:[%s1] sm:$0xff]
    %v28 = vld [vmem:[%s1 + $0x8] sm:$0xff]
    %v29 = vld [vmem:[%s3] sm:$0xff]
    %v30 = vld [vmem:[%s3 + $0x8] sm:$0xff]
    %v31 = vld [vmem:[%s3 + $0x10] sm:$0xff]
    %v32 = vld [vmem:[%s3 + $0x18] sm:$0xff]
    %vm33 = vcmask 261120
    %v35 = vsel %vm33, %v27, 0
    %v38 = vsel %vm33, %v28, 0
    %40 = vmatpush.msra.mxu0 0.0
    %41 = vmatpush.msra.mxu0 0.0
    %42 = vmatpush.msra.mxu0 0.0
    %43 = vmatpush.msra.mxu0 0.0
    %44 = vmatpush.msra.mxu0 0.0
    %45 = vmatpush.msra.mxu0 0.0
    %46 = vmatpush.msra.mxu0 0.0
    %47 = vmatpush.msra.mxu0 0.0
    %48 = vmatpush.msra.mxu0 0.0
    %49 = vmatpush.msra.mxu0 0.0
    %50 = vmatpush.msra.mxu0 0.0
    %51 = vmatpush.msra.mxu0 0.0
    %52 = vmatpush.msra.mxu0 %v32
    %53 = vmatpush.msra.mxu0 %v31
    %54 = vmatpush.msra.mxu0 %v30
    %55 = vmatpush.msra.mxu0 %v29
    %56 = vmatmul.f32.gmra.mxu0 %v35
    %v57 = vpop.f32.mrf.mxu0
    %v58 = vadd.f32 0.0, %v57
    %59 = vmatmul.f32.gmra.mxu0 %v38
    %v60 = vpop.f32.mrf.mxu0
    %v61 = vadd.f32 0.0, %v60
    %62 = vdwg.mxu0
    %v64 = vsel %vm33, %v21, 0
    %v67 = vsel %vm33, %v22, 0
    %69 = vmatpush.msra.mxu0 0.0
    %70 = vmatpush.msra.mxu0 0.0
    %71 = vmatpush.msra.mxu0 0.0
    %72 = vmatpush.msra.mxu0 0.0
    %73 = vmatpush.msra.mxu0 0.0
    %74 = vmatpush.msra.mxu0 0.0
    %75 = vmatpush.msra.mxu0 0.0
    %76 = vmatpush.msra.mxu0 0.0
    %77 = vmatpush.msra.mxu0 0.0
    %78 = vmatpush.msra.mxu0 0.0
    %79 = vmatpush.msra.mxu0 0.0
    %80 = vmatpush.msra.mxu0 0.0
    %81 = vmatpush.msra.mxu0 %v26
    %82 = vmatpush.msra.mxu0 %v25
    %83 = vmatpush.msra.mxu0 %v24
    %84 = vmatpush.msra.mxu0 %v23
    %85 = vmatmul.f32.gmra.mxu0 %v64
    %v86 = vpop.f32.mrf.mxu0
    %v87 = vadd.f32 %v58, %v86
    %88 = vmatmul.f32.gmra.mxu0 %v67
    %v89 = vpop.f32.mrf.mxu0
    %v90 = vadd.f32 %v61, %v89
    %91 = vdwg.mxu0
    %v92 = vld [vmem:[%s4] sm:$0x1]
    %v94 = vperm.slane %v92, 0
    %v96 = vadd.f32 %v87, %v94
    %v97 = vadd.f32 %v90, %v94
    %vm98 = vcmask 130048
    %99 = vst.msk [vmem:[#allocation2] sm:$0xff] %vm98, %v96
    %100 = vst.msk [vmem:[#allocation2 + $0x8] sm:$0xff] %vm98, %v97
    // Predicated region
    $region22: #{bidirectional_lstm.5} parent=1 // pred_check
      _
    $region23: #{bidirectional_lstm.5} parent=1 // pred_check_branch
      %102 = sbr.rel (0) target = $region25
    $region24: #{bidirectional_lstm.5} parent=1 // pred_region
      %104 = vsyncadd [#allocation3], 0
      %s105 = sshll.u32 [#allocation2], 4
      %s106 = int_to_ptr.vmem [resolvable:$true] %s105
      %s107 = sshll.u32 %s5, 4
      %s108 = int_to_ptr.hbm [resolvable:$true] %s107
      %113 = dma.vmem_to_hbm [thread:$0]  %s106, 256, %s108, [#allocation3], 128, 128, 8
    $region25: #{bidirectional_lstm.5} parent=1 // pred_fallthru
      _
    // Predicated region
    $region26: #{bidirectional_lstm.5} parent=1 // pred_check
      _
    $region27: #{bidirectional_lstm.5} parent=1 // pred_check_branch
      %115 = sbr.rel (0) target = $region29
    $region28: #{bidirectional_lstm.5} parent=1 // pred_region
      %117 = dma.done [#allocation3], 256
    $region29: #{bidirectional_lstm.5} parent=1 // pred_fallthru
      _
    %118 = vsyncpa [#allocation3], 1

// kernel: bidirectional_lstm.3
$region0: #{bidirectional_lstm.3}
  #allocation0 [shape = 'u32[]', space=smem, size = 0x4, offset = 0x4, fixed_abs, tag = 'smem constant byte address 0x4 - core index']
  #allocation1 [shape = 'u32[72,128]{1,0:T(1,128)}', space=vmem, size = 0x9000, scoped, tag = 'internal scratch']
  %s0 = inlined_call_operand.vmem [shape: f32[16,32], index: 0, kind: input, shape index: {}]
  %s1 = inlined_call_operand.vmem [shape: f32[32,256], index: 1, kind: input, shape index: {}]
  %s2 = inlined_call_operand.vmem [shape: f32[1,256], index: 2, kind: input, shape index: {}]
  %s3 = inlined_call_operand.vmem [shape: f32[16,128], index: 3, kind: output, shape index: {0}]
  %s4 = inlined_call_operand.vmem [shape: f32[16,128], index: 4, kind: output, shape index: {1}]
  %5 = xla_tuple %s3, %s4
  %s6 = sld [smem:[#allocation0]]
  $region30: #{bidirectional_lstm.3} parent=0
    _
  %s8 = ssub.s32 1, %s6
  %s9 = scalar_select 0, %s8, %s6
  // Predicated region
  $region2: #{bidirectional_lstm.3} parent=0 // pred_check
    _
  $region3: #{bidirectional_lstm.3} parent=0 // pred_check_branch
    %11 = sbr.rel (0) target = $region5
  $region4: #{bidirectional_lstm.3} parent=0 // pred_region
    _
  $region5: #{bidirectional_lstm.3} parent=0 // pred_fallthru
    _
  // Predicated region
  $region6: #{bidirectional_lstm.3} parent=0 // pred_check
    _
  $region7: #{bidirectional_lstm.3} parent=0 // pred_check_branch
    %13 = sbr.rel (0) target = $region9
  $region8: #{bidirectional_lstm.3} parent=0 // pred_region
    _
  $region9: #{bidirectional_lstm.3} parent=0 // pred_fallthru
    _
  // Predicated region
  $region10: #{bidirectional_lstm.3} parent=0 // pred_check
    _
  $region11: #{bidirectional_lstm.3} parent=0 // pred_check_branch
    %15 = sbr.rel (0) target = $region13
  $region12: #{bidirectional_lstm.3} parent=0 // pred_region
    _
  $region13: #{bidirectional_lstm.3} parent=0 // pred_fallthru
    _
  %v16 = vld [vmem:[%s0] sm:$0xff]
  %v17 = vld [vmem:[%s0 + $0x8] sm:$0xff]
  %v18 = vld [vmem:[%s1] sm:$0xff]
  %v19 = vld [vmem:[%s1 + $0x8] sm:$0xff]
  %v20 = vld [vmem:[%s1 + $0x10] sm:$0xff]
  %v21 = vld [vmem:[%s1 + $0x18] sm:$0xff]
  %v22 = vld [vmem:[%s1 + $0x20] sm:$0xff]
  %v23 = vld [vmem:[%s1 + $0x28] sm:$0xff]
  %v24 = vld [vmem:[%s1 + $0x30] sm:$0xff]
  %v25 = vld [vmem:[%s1 + $0x38] sm:$0xff]
  %v26 = vld [vmem:[%s2] sm:$0x3]
  %v28 = vperm.slane %v26, 0
  %v29 = vperm.slane %v26, 1
  %vm32 = vcmask 261120
  %v34 = vsel %vm32, %v16, 0
  %v37 = vsel %vm32, %v17, 0
  %39 = vmatpush.msra.mxu0 0.0
  %40 = vmatpush.msra.mxu0 0.0
  %41 = vmatpush.msra.mxu0 0.0
  %42 = vmatpush.msra.mxu0 0.0
  %43 = vmatpush.msra.mxu0 0.0
  %44 = vmatpush.msra.mxu0 0.0
  %45 = vmatpush.msra.mxu0 0.0
  %46 = vmatpush.msra.mxu0 0.0
  %47 = vmatpush.msra.mxu0 0.0
  %48 = vmatpush.msra.mxu0 0.0
  %49 = vmatpush.msra.mxu0 0.0
  %50 = vmatpush.msra.mxu0 0.0
  %51 = vmatpush.msra.mxu0 %v24
  %52 = vmatpush.msra.mxu0 %v22
  %53 = vmatpush.msra.mxu0 %v20
  %54 = vmatpush.msra.mxu0 %v18
  %55 = vmatmul.f32.gmra.mxu0 %v34
  %v56 = vpop.f32.mrf.mxu0
  %v57 = vadd.f32 %v28, %v56
  %58 = vmatmul.f32.gmra.mxu0 %v37
  %v59 = vpop.f32.mrf.mxu0
  %v60 = vadd.f32 %v28, %v59
  %61 = vdwg.mxu0
  %62 = vmatpush.msra.mxu0 0.0
  %63 = vmatpush.msra.mxu0 0.0
  %64 = vmatpush.msra.mxu0 0.0
  %65 = vmatpush.msra.mxu0 0.0
  %66 = vmatpush.msra.mxu0 0.0
  %67 = vmatpush.msra.mxu0 0.0
  %68 = vmatpush.msra.mxu0 0.0
  %69 = vmatpush.msra.mxu0 0.0
  %70 = vmatpush.msra.mxu0 0.0
  %71 = vmatpush.msra.mxu0 0.0
  %72 = vmatpush.msra.mxu0 0.0
  %73 = vmatpush.msra.mxu0 0.0
  %74 = vmatpush.msra.mxu0 %v25
  %75 = vmatpush.msra.mxu0 %v23
  %76 = vmatpush.msra.mxu0 %v21
  %77 = vmatpush.msra.mxu0 %v19
  %78 = vmatmul.f32.gmra.mxu0 %v34
  %v79 = vpop.f32.mrf.mxu0
  %v80 = vadd.f32 %v29, %v79
  %81 = vmatmul.f32.gmra.mxu0 %v37
  %v82 = vpop.f32.mrf.mxu0
  %v83 = vadd.f32 %v29, %v82
  %84 = vdwg.mxu0
  %85 = vst [vmem:[%s3] sm:$0xff] %v57
  %86 = vst [vmem:[%s3 + $0x8] sm:$0xff] %v60
  %87 = vst [vmem:[%s4] sm:$0xff] %v80
  %88 = vst [vmem:[%s4 + $0x8] sm:$0xff] %v83
  // Predicated region
  $region14: #{bidirectional_lstm.3} parent=0 // pred_check
    _
  $region15: #{bidirectional_lstm.3} parent=0 // pred_check_branch
    %90 = sbr.rel (0) target = $region17
  $region16: #{bidirectional_lstm.3} parent=0 // pred_region
    _
  $region17: #{bidirectional_lstm.3} parent=0 // pred_fallthru
    _
  // Predicated region
  $region18: #{bidirectional_lstm.3} parent=0 // pred_check
    _
  $region19: #{bidirectional_lstm.3} parent=0 // pred_check_branch
    %92 = sbr.rel (0) target = $region21
  $region20: #{bidirectional_lstm.3} parent=0 // pred_region
    _
  $region21: #{bidirectional_lstm.3} parent=0 // pred_fallthru
    _
  // Predicated region
  $region22: #{bidirectional_lstm.3} parent=0 // pred_check
    _
  $region23: #{bidirectional_lstm.3} parent=0 // pred_check_branch
    %94 = sbr.rel (0) target = $region25
  $region24: #{bidirectional_lstm.3} parent=0 // pred_region
    _
  $region25: #{bidirectional_lstm.3} parent=0 // pred_fallthru
    _
  // Predicated region
  $region26: #{bidirectional_lstm.3} parent=0 // pred_check
    _
  $region27: #{bidirectional_lstm.3} parent=0 // pred_check_branch
    %96 = sbr.rel (0) target = $region29
  $region28: #{bidirectional_lstm.3} parent=0 // pred_region
    _
  $region29: #{bidirectional_lstm.3} parent=0 // pred_fallthru
    _

// kernel: bidirectional_lstm.4
$region0: #{bidirectional_lstm.4}
  #allocation0 [shape = 'u32[]', space=smem, size = 0x4, offset = 0x4, fixed_abs, tag = 'smem constant byte address 0x4 - core index']
  #allocation1 [shape = 'u32[72,128]{1,0:T(1,128)}', space=vmem, size = 0x9000, scoped, tag = 'internal scratch']
  #allocation2 [shape = 'f32[4,32]{1,0:T(4,128)}', space=vmem, size = 0x800, scoped, tag = 'scratch operand']
  #allocation3 [shape = 'f32[4,32]{1,0:T(4,128)}', space=vmem, size = 0x800, scoped, tag = 'scratch operand']
  %s0 = inlined_call_operand.vmem [shape: f32[8,2,128], index: 0, kind: input, shape index: {}]
  %s1 = inlined_call_operand.vmem [shape: f32[8,2,128], index: 1, kind: input, shape index: {}]
  %s2 = inlined_call_operand.vmem [shape: f32[32,256], index: 2, kind: input, shape index: {}]
  %s3 = inlined_call_operand.vmem [shape: f32[8,2,32], index: 3, kind: output, shape index: {0}]
  %s4 = inlined_call_operand.vmem [shape: f32[8,2,32], index: 4, kind: output, shape index: {1}]
  %5 = xla_tuple %s3, %s4
  %s6 = sld [smem:[#allocation0]]
  $region57: #{bidirectional_lstm.4} parent=0
    _
  %s8 = ssub.s32 1, %s6
  %s9 = scalar_select 0, %s8, %s6
  loop: start=0, step=1, limit=4
  $region2: #{bidirectional_lstm.4} parent=0 // loop_pre_header
    _
  $region3: #{bidirectional_lstm.4} parent=0 // loop_header
    %s11 = sphi 0, %s15
    %p12 = scmp.ge.s32.totalorder %s11, 4
    %s21 = sphi 0, %s23
    %s24 = sphi 0, %s21
    %s25 = sphi 0, %s24
    %s41 = sphi 0, %s25
    %s49 = sphi 0, %s51
    %s52 = sphi 0, %s49
    %s53 = sphi 0, %s52
    %s69 = sphi 0, %s53
    %s73 = sphi 0, %s73
    %s75 = sphi 0, %s73
    %s76 = sphi 0, %s75
    %s90 = sphi 0, %s76
    %s96 = sphi 0, %s98
    %s99 = sphi 0, %s96
    %s100 = sphi 0, %s99
    %s116 = sphi 0, %s100
    %s124 = sphi 0, %s126
    %s127 = sphi 0, %s124
    %s128 = sphi 0, %s127
    %s144 = sphi 0, %s128
  $region4: #{bidirectional_lstm.4} parent=0 // loop_header_branch
    %14 = sbr.rel (%p12) target = $region8
  $region5: #{bidirectional_lstm.4} parent=0 // loop_body
    %s16 = ssub.s32 %s11, 1
    %s17 = ssub.s32 %s11, 2
    %s18 = sadd.s32 %s11, 1
    %s19 = ssub.s32 %s11, %s18
    %p20 = scmp.eq.s32.totalorder %s19, 0
    %s22 = sadd.s32 %s21, 1
    %s23 = scalar_select %p20, %s21, %s22
    %p26 = pneg %p20
    %p27 = scmp.eq.s32.totalorder %s11, 1
    %p28 = por %p26, %p27
    %p29 = scmp.ne.s32.totalorder %s21, %s24
    %p30 = scmp.eq.s32.totalorder %s11, 0
    %p31 = por %p29, %p30
    %p32 = scmp.ne.s32.totalorder %s21, %s24
    %p33 = scmp.eq.s32.totalorder %s16, 1
    %p34 = por %p32, %p33
    %p35 = scmp.ne.s32.totalorder %s24, %s25
    %p36 = scmp.eq.s32.totalorder %s16, 0
    %p37 = por %p35, %p36
    %p38 = scmp.ne.s32.totalorder %s24, %s25
    %p39 = scmp.eq.s32.totalorder %s17, 1
    %p40 = por %p38, %p39
    %p42 = scmp.ne.s32.totalorder %s25, %s41
    %p43 = scmp.eq.s32.totalorder %s17, 0
    %p44 = por %p42, %p43
    %s45 = ssub.s32 1, %s11
    %s46 = ssub.s32 1, %s18
    %s47 = ssub.s32 %s45, %s46
    %p48 = scmp.eq.s32.totalorder %s47, 0
    %s50 = sadd.s32 %s49, 1
    %s51 = scalar_select %p48, %s49, %s50
    %p54 = pneg %p48
    %p55 = scmp.eq.s32.totalorder %s11, 1
    %p56 = por %p54, %p55
    %p57 = scmp.ne.s32.totalorder %s49, %s52
    %p58 = scmp.eq.s32.totalorder %s11, 0
    %p59 = por %p57, %p58
    %p60 = scmp.ne.s32.totalorder %s49, %s52
    %p61 = scmp.eq.s32.totalorder %s16, 1
    %p62 = por %p60, %p61
    %p63 = scmp.ne.s32.totalorder %s52, %s53
    %p64 = scmp.eq.s32.totalorder %s16, 0
    %p65 = por %p63, %p64
    %p66 = scmp.ne.s32.totalorder %s52, %s53
    %p67 = scmp.eq.s32.totalorder %s17, 1
    %p68 = por %p66, %p67
    %p70 = scmp.ne.s32.totalorder %s53, %s69
    %p71 = scmp.eq.s32.totalorder %s17, 0
    %p72 = por %p70, %p71
    %s74 = sadd.s32 %s73, 1
    %p77 = scmp.eq.s32.totalorder %s11, 1
    %p78 = scmp.ne.s32.totalorder %s73, %s75
    %p79 = scmp.eq.s32.totalorder %s11, 0
    %p80 = por %p78, %p79
    %p81 = scmp.ne.s32.totalorder %s73, %s75
    %p82 = scmp.eq.s32.totalorder %s16, 1
    %p83 = por %p81, %p82
    %p84 = scmp.ne.s32.totalorder %s75, %s76
    %p85 = scmp.eq.s32.totalorder %s16, 0
    %p86 = por %p84, %p85
    %p87 = scmp.ne.s32.totalorder %s75, %s76
    %p88 = scmp.eq.s32.totalorder %s17, 1
    %p89 = por %p87, %p88
    %p91 = scmp.ne.s32.totalorder %s76, %s90
    %p92 = scmp.eq.s32.totalorder %s17, 0
    %p93 = por %p91, %p92
    %s94 = ssub.s32 %s11, %s18
    %p95 = scmp.eq.s32.totalorder %s94, 0
    %s97 = sadd.s32 %s96, 1
    %s98 = scalar_select %p95, %s96, %s97
    %p101 = pneg %p95
    %p102 = scmp.eq.s32.totalorder %s11, 1
    %p103 = por %p101, %p102
    %p104 = scmp.ne.s32.totalorder %s96, %s99
    %p105 = scmp.eq.s32.totalorder %s11, 0
    %p106 = por %p104, %p105
    %p107 = scmp.ne.s32.totalorder %s96, %s99
    %p108 = scmp.eq.s32.totalorder %s16, 1
    %p109 = por %p107, %p108
    %p110 = scmp.ne.s32.totalorder %s99, %s100
    %p111 = scmp.eq.s32.totalorder %s16, 0
    %p112 = por %p110, %p111
    %p113 = scmp.ne.s32.totalorder %s99, %s100
    %p114 = scmp.eq.s32.totalorder %s17, 1
    %p115 = por %p113, %p114
    %p117 = scmp.ne.s32.totalorder %s100, %s116
    %p118 = scmp.eq.s32.totalorder %s17, 0
    %p119 = por %p117, %p118
    %s120 = ssub.s32 1, %s11
    %s121 = ssub.s32 1, %s18
    %s122 = ssub.s32 %s120, %s121
    %p123 = scmp.eq.s32.totalorder %s122, 0
    %s125 = sadd.s32 %s124, 1
    %s126 = scalar_select %p123, %s124, %s125
    %p129 = pneg %p123
    %p130 = scmp.eq.s32.totalorder %s11, 1
    %p131 = por %p129, %p130
    %p132 = scmp.ne.s32.totalorder %s124, %s127
    %p133 = scmp.eq.s32.totalorder %s11, 0
    %p134 = por %p132, %p133
    %p135 = scmp.ne.s32.totalorder %s124, %s127
    %p136 = scmp.eq.s32.totalorder %s16, 1
    %p137 = por %p135, %p136
    %p138 = scmp.ne.s32.totalorder %s127, %s128
    %p139 = scmp.eq.s32.totalorder %s16, 0
    %p140 = por %p138, %p139
    %p141 = scmp.ne.s32.totalorder %s127, %s128
    %p142 = scmp.eq.s32.totalorder %s17, 1
    %p143 = por %p141, %p142
    %p145 = scmp.ne.s32.totalorder %s128, %s144
    %p146 = scmp.eq.s32.totalorder %s17, 0
    %p147 = por %p145, %p146
    %p148 = scmp.le.s32.totalorder 1, %s11
    %p149 = scmp.lt.s32.totalorder %s11, 3
    %p150 = pnand %p148, %p149
    %p151 = pneg %p150
    // Predicated region
    $region9: #{bidirectional_lstm.4} parent=5 // pred_check
      _
    $region10: #{bidirectional_lstm.4} parent=5 // pred_check_branch
      %153 = sbr.rel (%p150) target = $region12
    $region11: #{bidirectional_lstm.4} parent=5 // pred_region
      %s154 = ssub.s32 %s11, 1
      // Predicated region
      $region13: #{bidirectional_lstm.4} parent=11 // pred_check
        %p155 = pneg %p86
      $region14: #{bidirectional_lstm.4} parent=11 // pred_check_branch
        %157 = sbr.rel (%p155) target = $region16
      $region15: #{bidirectional_lstm.4} parent=11 // pred_region
        _
      $region16: #{bidirectional_lstm.4} parent=11 // pred_fallthru
        _
    $region12: #{bidirectional_lstm.4} parent=5 // pred_fallthru
      _
    %p158 = scmp.lt.s32.totalorder %s11, 2
    // Predicated region
    $region17: #{bidirectional_lstm.4} parent=5 // pred_check
      %p159 = pneg %p158
    $region18: #{bidirectional_lstm.4} parent=5 // pred_check_branch
      %161 = sbr.rel (%p159) target = $region20
    $region19: #{bidirectional_lstm.4} parent=5 // pred_region
      // Predicated region
      $region21: #{bidirectional_lstm.4} parent=19 // pred_check
        %p162 = pneg %p31
      $region22: #{bidirectional_lstm.4} parent=19 // pred_check_branch
        %164 = sbr.rel (%p162) target = $region24
      $region23: #{bidirectional_lstm.4} parent=19 // pred_region
        %s165 = smul.u32 4, %s11
        %p166 = scmp.lt.s32.totalorder %s165, 7
        %s167 = scalar_select %p166, %s165, 7
        %s168 = smul.addr %s167, 2
        %s169 = scalar_lea.vmem %s0, %s168
        %s170 = smul.u32 4, %s11
      $region24: #{bidirectional_lstm.4} parent=19 // pred_fallthru
        _
      // Predicated region
      $region25: #{bidirectional_lstm.4} parent=19 // pred_check
        %p171 = pneg %p59
      $region26: #{bidirectional_lstm.4} parent=19 // pred_check_branch
        %173 = sbr.rel (%p171) target = $region28
      $region27: #{bidirectional_lstm.4} parent=19 // pred_region
        %s174 = ssub.s32 1, %s11
        %s175 = smul.u32 4, %s174
        %p176 = scmp.lt.s32.totalorder %s175, 7
        %s177 = scalar_select %p176, %s175, 7
        %s178 = smul.addr %s177, 2
        %s179 = scalar_lea.vmem %s1, %s178
        %s180 = ssub.s32 1, %s11
        %s181 = smul.u32 4, %s180
      $region28: #{bidirectional_lstm.4} parent=19 // pred_fallthru
        _
    $region20: #{bidirectional_lstm.4} parent=5 // pred_fallthru
      _
    %p182 = scmp.le.s32.totalorder 1, %s11
    %p183 = scmp.lt.s32.totalorder %s11, 3
    %p184 = pnand %p182, %p183
    %p185 = pneg %p184
    // Predicated region
    $region29: #{bidirectional_lstm.4} parent=5 // pred_check
      _
    $region30: #{bidirectional_lstm.4} parent=5 // pred_check_branch
      %187 = sbr.rel (%p184) target = $region32
    $region31: #{bidirectional_lstm.4} parent=5 // pred_region
      %s188 = ssub.s32 %s11, 1
      %s189 = smul.u32 4, %s16
      %p190 = scmp.lt.s32.totalorder %s189, 7
      %s191 = scalar_select %p190, %s189, 7
      %s192 = smul.addr %s191, 2
      %s193 = scalar_lea.vmem %s0, %s192
      %p194 = pneg %p37
      %p195 = pneg %p34
      %s196 = ssub.s32 1, %s16
      %s197 = smul.u32 4, %s196
      %p198 = scmp.lt.s32.totalorder %s197, 7
      %s199 = scalar_select %p198, %s197, 7
      %s200 = smul.addr %s199, 2
      %s201 = scalar_lea.vmem %s1, %s200
      %p202 = pneg %p65
      %p203 = pneg %p62
      %p204 = pneg %p86
      %p205 = pneg %p83
      %p206 = pneg %p112
      %p207 = pneg %p109
      %s208 = smul.u32 4, %s16
      %p209 = scmp.lt.s32.totalorder %s208, 7
      %s210 = scalar_select %p209, %s208, 7
      %s211 = smul.addr %s210, 2
      %s212 = scalar_lea.vmem %s3, %s211
      %p213 = pneg %p140
      %p214 = pneg %p137
      %s215 = ssub.s32 1, %s16
      %s216 = smul.u32 4, %s215
      %p217 = scmp.lt.s32.totalorder %s216, 7
      %s218 = scalar_select %p217, %s216, 7
      %s219 = smul.addr %s218, 2
      %s220 = scalar_lea.vmem %s4, %s219
      %s221 = smul.u32 4, %s16
      %p222 = scmp.lt.s32.totalorder %s221, 7
      %s223 = scalar_select %p222, %s221, 7
      %s224 = smul.addr %s223, 2
      %s225 = scalar_lea.vmem %s0, %s224
      %s226 = smul.u32 4, %s16
      %s227 = ssub.s32 1, %s16
      %s228 = smul.u32 4, %s227
      %p229 = scmp.lt.s32.totalorder %s228, 7
      %s230 = scalar_select %p229, %s228, 7
      %s231 = smul.addr %s230, 2
      %s232 = scalar_lea.vmem %s1, %s231
      %s233 = ssub.s32 1, %s16
      %s234 = smul.u32 4, %s233
      %s235 = smul.u32 4, %s16
      %p236 = scmp.lt.s32.totalorder %s235, 7
      %s237 = scalar_select %p236, %s235, 7
      %s238 = smul.addr %s237, 2
      %s239 = scalar_lea.vmem %s3, %s238
      %s240 = smul.u32 4, %s16
      %s241 = ssub.s32 1, %s16
      %s242 = smul.u32 4, %s241
      %p243 = scmp.lt.s32.totalorder %s242, 7
      %s244 = scalar_select %p243, %s242, 7
      %s245 = smul.addr %s244, 2
      %s246 = scalar_lea.vmem %s4, %s245
      %s247 = ssub.s32 1, %s16
      %s248 = smul.u32 4, %s247
      %p249 = scmp.eq.s32.totalorder %s16, 0
      // Predicated region
      $region33: #{bidirectional_lstm.4} parent=31 // pred_check
        %p250 = pneg %p249
      $region34: #{bidirectional_lstm.4} parent=31 // pred_check_branch
        %252 = sbr.rel (%p250) target = $region36
      $region35: #{bidirectional_lstm.4} parent=31 // pred_region
        %vm253 = vcmask 257024
        %254 = vst.msk [vmem:[#allocation2] sm:$0xf] %vm253, 0.0
        %255 = vst.msk [vmem:[#allocation3] sm:$0xf] %vm253, 0.0
      $region36: #{bidirectional_lstm.4} parent=31 // pred_fallthru
        _
      %v256 = vld [vmem:[#allocation2] sm:$0xf]
      %v257 = vld [vmem:[#allocation3] sm:$0xf]
      %v258 = vld [vmem:[%s2] sm:$0xff]
      %v259 = vld [vmem:[%s2 + $0x8] sm:$0xff]
      %v260 = vld [vmem:[%s2 + $0x10] sm:$0xff]
      %v261 = vld [vmem:[%s2 + $0x18] sm:$0xff]
      %v262 = vld [vmem:[%s2 + $0x20] sm:$0xff]
      %v263 = vld [vmem:[%s2 + $0x28] sm:$0xff]
      %v264 = vld [vmem:[%s2 + $0x30] sm:$0xff]
      %v265 = vld [vmem:[%s2 + $0x38] sm:$0xff]
      %vm266 = vcmask 261120
      %v268 = vsel %vm266, %v256, 0
      %270 = vmatpush.msra.mxu0 0.0
      %271 = vmatpush.msra.mxu0 0.0
      %272 = vmatpush.msra.mxu0 0.0
      %273 = vmatpush.msra.mxu0 0.0
      %274 = vmatpush.msra.mxu0 0.0
      %275 = vmatpush.msra.mxu0 0.0
      %276 = vmatpush.msra.mxu0 0.0
      %277 = vmatpush.msra.mxu0 0.0
      %278 = vmatpush.msra.mxu0 0.0
      %279 = vmatpush.msra.mxu0 0.0
      %280 = vmatpush.msra.mxu0 0.0
      %281 = vmatpush.msra.mxu0 0.0
      %282 = vmatpush.msra.mxu0 %v264
      %283 = vmatpush.msra.mxu0 %v262
      %284 = vmatpush.msra.mxu0 %v260
      %285 = vmatpush.msra.mxu0 %v258
      %286 = vmatmul.f32.gmra.mxu0 %v268
      %v287 = vpop.f32.mrf.mxu0
      %v288 = vadd.f32 0.0, %v287
      %289 = vdwg.mxu0
      %290 = vmatpush.msra.mxu0 0.0
      %291 = vmatpush.msra.mxu0 0.0
      %292 = vmatpush.msra.mxu0 0.0
      %293 = vmatpush.msra.mxu0 0.0
      %294 = vmatpush.msra.mxu0 0.0
      %295 = vmatpush.msra.mxu0 0.0
      %296 = vmatpush.msra.mxu0 0.0
      %297 = vmatpush.msra.mxu0 0.0
      %298 = vmatpush.msra.mxu0 0.0
      %299 = vmatpush.msra.mxu0 0.0
      %300 = vmatpush.msra.mxu0 0.0
      %301 = vmatpush.msra.mxu0 0.0
      %302 = vmatpush.msra.mxu0 %v265
      %303 = vmatpush.msra.mxu0 %v263
      %304 = vmatpush.msra.mxu0 %v261
      %305 = vmatpush.msra.mxu0 %v259
      %306 = vmatmul.f32.gmra.mxu0 %v268
      %v307 = vpop.f32.mrf.mxu0
      %v308 = vadd.f32 0.0, %v307
      %309 = vdwg.mxu0
      %v310 = vld [vmem:[%s225] sm:$0x3]
      %v311 = vadd.f32 %v310, %v288
      %s312 = scalar_lea.vmem %s232, 6
      %v313 = vld [vmem:[%s312] sm:$0x3]
      %v315 = vrot.slane %v308, 2
      %v317 = vadd.f32 %v313, %v315
      %v319 = vrot.slane %v317, 6
      %vm321 = vcmask 1041408
      %v322 = vsel %vm321, %v311, %v319
      %v323 = vxor.u32 %v322, 2147483648
      %v324 = vmul.f32 %v323, 1.442695
      %v325 = vpow.pop %v324
      %v326 = vadd.f32 %v325, 1.0
      %v327 = vrcp.pop %v326
      %v328 = vmul.f32 %v326, %v327
      %v329 = vsub.f32 1.0, %v328
      %v330 = vmul.f32 %v327, %v329
      %v331 = vadd.f32 %v327, %v330
      %vm332 = vweird.f32 %v326
      %vm333 = vweird.f32 %v327
      %vm334 = vmor %vm332, %vm333
      %v335 = vsel %vm334, %v327, %v331
      %v336 = vand.u32 2147483647, %v326
      %vm337 = vcmp.eq.f32.partialorder %v336, 8.507059e+37
      %v338 = vand.u32 %v326, 2147483648
      %v339 = vor.u32 1.1754944e-38, %v338
      %v340 = vsel %vm337, %v339, %v335
      %v341 = vmul.f32 1.0, %v340
      %v342 = vtanh.pop %v322
      %344 = vrot.lane.b32.xlu0 %v257, 32
      %v345 = vpop.permute.xlu0 %344
      %v347 = vmul.f32 %v341, %v345
      %349 = vrot.lane.b32.xlu0 %v342, 64
      %v350 = vpop.permute.xlu0 %349
      %v352 = vmul.f32 %v341, %v350
      %354 = vrot.lane.b32.xlu0 %v352, 32
      %v355 = vpop.permute.xlu0 %354
      %v357 = vadd.f32 %v347, %v355
      %v358 = vtanh.pop %v357
      %360 = vrot.lane.b32.xlu0 %v358, 64
      %v361 = vpop.permute.xlu0 %360
      %v363 = vmul.f32 %v341, %v361
      %365 = vrot.lane.b32.xlu0 %v363, 32
      %v366 = vpop.permute.xlu0 %365
      %vm368 = vcmask 254976
      %369 = vst.msk [vmem:[%s239] sm:$0x3] %vm368, %v366
      %s370 = scalar_lea.vmem %s246, 6
      %vm371 = vcmask 257026
      %372 = vst.msk [vmem:[%s370 - $0x2] sm:$0xc] %vm371, %v366
      %v373 = vld [vmem:[%s2] sm:$0xff]
      %v374 = vld [vmem:[%s2 + $0x8] sm:$0xff]
      %v375 = vld [vmem:[%s2 + $0x10] sm:$0xff]
      %v376 = vld [vmem:[%s2 + $0x18] sm:$0xff]
      %v377 = vld [vmem:[%s2 + $0x20] sm:$0xff]
      %v378 = vld [vmem:[%s2 + $0x28] sm:$0xff]
      %v379 = vld [vmem:[%s2 + $0x30] sm:$0xff]
      %v380 = vld [vmem:[%s2 + $0x38] sm:$0xff]
      %v381 = vsel %vm266, %v366, 0
      %383 = vmatpush.msra.mxu0 0.0
      %384 = vmatpush.msra.mxu0 0.0
      %385 = vmatpush.msra.mxu0 0.0
      %386 = vmatpush.msra.mxu0 0.0
      %387 = vmatpush.msra.mxu0 0.0
      %388 = vmatpush.msra.mxu0 0.0
      %389 = vmatpush.msra.mxu0 0.0
      %390 = vmatpush.msra.mxu0 0.0
      %391 = vmatpush.msra.mxu0 0.0
      %392 = vmatpush.msra.mxu0 0.0
      %393 = vmatpush.msra.mxu0 0.0
      %394 = vmatpush.msra.mxu0 0.0
      %395 = vmatpush.msra.mxu0 %v379
      %396 = vmatpush.msra.mxu0 %v377
      %397 = vmatpush.msra.mxu0 %v375
      %398 = vmatpush.msra.mxu0 %v373
      %399 = vmatmul.f32.gmra.mxu0 %v381
      %v400 = vpop.f32.mrf.mxu0
      %v401 = vadd.f32 0.0, %v400
      %402 = vdwg.mxu0
      %403 = vmatpush.msra.mxu0 0.0
      %404 = vmatpush.msra.mxu0 0.0
      %405 = vmatpush.msra.mxu0 0.0
      %406 = vmatpush.msra.mxu0 0.0
      %407 = vmatpush.msra.mxu0 0.0
      %408 = vmatpush.msra.mxu0 0.0
      %409 = vmatpush.msra.mxu0 0.0
      %410 = vmatpush.msra.mxu0 0.0
      %411 = vmatpush.msra.mxu0 0.0
      %412 = vmatpush.msra.mxu0 0.0
      %413 = vmatpush.msra.mxu0 0.0
      %414 = vmatpush.msra.mxu0 0.0
      %415 = vmatpush.msra.mxu0 %v380
      %416 = vmatpush.msra.mxu0 %v378
      %417 = vmatpush.msra.mxu0 %v376
      %418 = vmatpush.msra.mxu0 %v374
      %419 = vmatmul.f32.gmra.mxu0 %v381
      %v420 = vpop.f32.mrf.mxu0
      %v421 = vadd.f32 0.0, %v420
      %422 = vdwg.mxu0
      %s423 = scalar_lea.vmem %s225, 2
      %v424 = vld [vmem:[%s423] sm:$0x3]
      %v425 = vadd.f32 %v424, %v401
      %s426 = scalar_lea.vmem %s232, 4
      %v427 = vld [vmem:[%s426] sm:$0x3]
      %v429 = vrot.slane %v421, 2
      %v431 = vadd.f32 %v427, %v429
      %v433 = vrot.slane %v431, 6
      %v435 = vsel %vm321, %v425, %v433
      %v436 = vxor.u32 %v435, 2147483648
      %v437 = vmul.f32 %v436, 1.442695
      %v438 = vpow.pop %v437
      %v439 = vadd.f32 %v438, 1.0
      %v440 = vrcp.pop %v439
      %v441 = vmul.f32 %v439, %v440
      %v442 = vsub.f32 1.0, %v441
      %v443 = vmul.f32 %v440, %v442
      %v444 = vadd.f32 %v440, %v443
      %vm445 = vweird.f32 %v439
      %vm446 = vweird.f32 %v440
      %vm447 = vmor %vm445, %vm446
      %v448 = vsel %vm447, %v440, %v444
      %v449 = vand.u32 2147483647, %v439
      %vm450 = vcmp.eq.f32.partialorder %v449, 8.507059e+37
      %v451 = vand.u32 %v439, 2147483648
      %v452 = vor.u32 1.1754944e-38, %v451
      %v453 = vsel %vm450, %v452, %v448
      %v454 = vmul.f32 1.0, %v453
      %v455 = vtanh.pop %v435
      %v456 = vmul.f32 %v454, %v357
      %458 = vrot.lane.b32.xlu0 %v455, 64
      %v459 = vpop.permute.xlu0 %458
      %v461 = vmul.f32 %v454, %v459
      %463 = vrot.lane.b32.xlu0 %v461, 32
      %v464 = vpop.permute.xlu0 %463
      %v466 = vadd.f32 %v456, %v464
      %v467 = vtanh.pop %v466
      %469 = vrot.lane.b32.xlu0 %v467, 64
      %v470 = vpop.permute.xlu0 %469
      %v472 = vmul.f32 %v454, %v470
      %474 = vrot.lane.b32.xlu0 %v472, 32
      %v475 = vpop.permute.xlu0 %474
      %s477 = scalar_lea.vmem %s239, 2
      %478 = vst.msk [vmem:[%s477] sm:$0x3] %vm368, %v475
      %s479 = scalar_lea.vmem %s246, 4
      %480 = vst.msk [vmem:[%s479 - $0x2] sm:$0xc] %vm371, %v475
      %v481 = vld [vmem:[%s2] sm:$0xff]
      %v482 = vld [vmem:[%s2 + $0x8] sm:$0xff]
      %v483 = vld [vmem:[%s2 + $0x10] sm:$0xff]
      %v484 = vld [vmem:[%s2 + $0x18] sm:$0xff]
      %v485 = vld [vmem:[%s2 + $0x20] sm:$0xff]
      %v486 = vld [vmem:[%s2 + $0x28] sm:$0xff]
      %v487 = vld [vmem:[%s2 + $0x30] sm:$0xff]
      %v488 = vld [vmem:[%s2 + $0x38] sm:$0xff]
      %v489 = vsel %vm266, %v475, 0
      %491 = vmatpush.msra.mxu0 0.0
      %492 = vmatpush.msra.mxu0 0.0
      %493 = vmatpush.msra.mxu0 0.0
      %494 = vmatpush.msra.mxu0 0.0
      %495 = vmatpush.msra.mxu0 0.0
      %496 = vmatpush.msra.mxu0 0.0
      %497 = vmatpush.msra.mxu0 0.0
      %498 = vmatpush.msra.mxu0 0.0
      %499 = vmatpush.msra.mxu0 0.0
      %500 = vmatpush.msra.mxu0 0.0
      %501 = vmatpush.msra.mxu0 0.0
      %502 = vmatpush.msra.mxu0 0.0
      %503 = vmatpush.msra.mxu0 %v487
      %504 = vmatpush.msra.mxu0 %v485
      %505 = vmatpush.msra.mxu0 %v483
      %506 = vmatpush.msra.mxu0 %v481
      %507 = vmatmul.f32.gmra.mxu0 %v489
      %v508 = vpop.f32.mrf.mxu0
      %v509 = vadd.f32 0.0, %v508
      %510 = vdwg.mxu0
      %511 = vmatpush.msra.mxu0 0.0
      %512 = vmatpush.msra.mxu0 0.0
      %513 = vmatpush.msra.mxu0 0.0
      %514 = vmatpush.msra.mxu0 0.0
      %515 = vmatpush.msra.mxu0 0.0
      %516 = vmatpush.msra.mxu0 0.0
      %517 = vmatpush.msra.mxu0 0.0
      %518 = vmatpush.msra.mxu0 0.0
      %519 = vmatpush.msra.mxu0 0.0
      %520 = vmatpush.msra.mxu0 0.0
      %521 = vmatpush.msra.mxu0 0.0
      %522 = vmatpush.msra.mxu0 0.0
      %523 = vmatpush.msra.mxu0 %v488
      %524 = vmatpush.msra.mxu0 %v486
      %525 = vmatpush.msra.mxu0 %v484
      %526 = vmatpush.msra.mxu0 %v482
      %527 = vmatmul.f32.gmra.mxu0 %v489
      %v528 = vpop.f32.mrf.mxu0
      %v529 = vadd.f32 0.0, %v528
      %530 = vdwg.mxu0
      %s531 = scalar_lea.vmem %s225, 4
      %v532 = vld [vmem:[%s531] sm:$0x3]
      %v533 = vadd.f32 %v532, %v509
      %s534 = scalar_lea.vmem %s232, 2
      %v535 = vld [vmem:[%s534] sm:$0x3]
      %v537 = vrot.slane %v529, 2
      %v539 = vadd.f32 %v535, %v537
      %v541 = vrot.slane %v539, 6
      %v543 = vsel %vm321, %v533, %v541
      %v544 = vxor.u32 %v543, 2147483648
      %v545 = vmul.f32 %v544, 1.442695
      %v546 = vpow.pop %v545
      %v547 = vadd.f32 %v546, 1.0
      %v548 = vrcp.pop %v547
      %v549 = vmul.f32 %v547, %v548
      %v550 = vsub.f32 1.0, %v549
      %v551 = vmul.f32 %v548, %v550
      %v552 = vadd.f32 %v548, %v551
      %vm553 = vweird.f32 %v547
      %vm554 = vweird.f32 %v548
      %vm555 = vmor %vm553, %vm554
      %v556 = vsel %vm555, %v548, %v552
      %v557 = vand.u32 2147483647, %v547
      %vm558 = vcmp.eq.f32.partialorder %v557, 8.507059e+37
      %v559 = vand.u32 %v547, 2147483648
      %v560 = vor.u32 1.1754944e-38, %v559
      %v561 = vsel %vm558, %v560, %v556
      %v562 = vmul.f32 1.0, %v561
      %v563 = vtanh.pop %v543
      %v564 = vmul.f32 %v562, %v466
      %566 = vrot.lane.b32.xlu0 %v563, 64
      %v567 = vpop.permute.xlu0 %566
      %v569 = vmul.f32 %v562, %v567
      %571 = vrot.lane.b32.xlu0 %v569, 32
      %v572 = vpop.permute.xlu0 %571
      %v574 = vadd.f32 %v564, %v572
      %v575 = vtanh.pop %v574
      %577 = vrot.lane.b32.xlu0 %v575, 64
      %v578 = vpop.permute.xlu0 %577
      %v580 = vmul.f32 %v562, %v578
      %582 = vrot.lane.b32.xlu0 %v580, 32
      %v583 = vpop.permute.xlu0 %582
      %s585 = scalar_lea.vmem %s239, 4
      %586 = vst.msk [vmem:[%s585] sm:$0x3] %vm368, %v583
      %s587 = scalar_lea.vmem %s246, 2
      %588 = vst.msk [vmem:[%s587 - $0x2] sm:$0xc] %vm371, %v583
      %v589 = vld [vmem:[%s2] sm:$0xff]
      %v590 = vld [vmem:[%s2 + $0x8] sm:$0xff]
      %v591 = vld [vmem:[%s2 + $0x10] sm:$0xff]
      %v592 = vld [vmem:[%s2 + $0x18] sm:$0xff]
      %v593 = vld [vmem:[%s2 + $0x20] sm:$0xff]
      %v594 = vld [vmem:[%s2 + $0x28] sm:$0xff]
      %v595 = vld [vmem:[%s2 + $0x30] sm:$0xff]
      %v596 = vld [vmem:[%s2 + $0x38] sm:$0xff]
      %v597 = vsel %vm266, %v583, 0
      %599 = vmatpush.msra.mxu0 0.0
      %600 = vmatpush.msra.mxu0 0.0
      %601 = vmatpush.msra.mxu0 0.0
      %602 = vmatpush.msra.mxu0 0.0
      %603 = vmatpush.msra.mxu0 0.0
      %604 = vmatpush.msra.mxu0 0.0
      %605 = vmatpush.msra.mxu0 0.0
      %606 = vmatpush.msra.mxu0 0.0
      %607 = vmatpush.msra.mxu0 0.0
      %608 = vmatpush.msra.mxu0 0.0
      %609 = vmatpush.msra.mxu0 0.0
      %610 = vmatpush.msra.mxu0 0.0
      %611 = vmatpush.msra.mxu0 %v595
      %612 = vmatpush.msra.mxu0 %v593
      %613 = vmatpush.msra.mxu0 %v591
      %614 = vmatpush.msra.mxu0 %v589
      %615 = vmatmul.f32.gmra.mxu0 %v597
      %v616 = vpop.f32.mrf.mxu0
      %v617 = vadd.f32 0.0, %v616
      %618 = vdwg.mxu0
      %619 = vmatpush.msra.mxu0 0.0
      %620 = vmatpush.msra.mxu0 0.0
      %621 = vmatpush.msra.mxu0 0.0
      %622 = vmatpush.msra.mxu0 0.0
      %623 = vmatpush.msra.mxu0 0.0
      %624 = vmatpush.msra.mxu0 0.0
      %625 = vmatpush.msra.mxu0 0.0
      %626 = vmatpush.msra.mxu0 0.0
      %627 = vmatpush.msra.mxu0 0.0
      %628 = vmatpush.msra.mxu0 0.0
      %629 = vmatpush.msra.mxu0 0.0
      %630 = vmatpush.msra.mxu0 0.0
      %631 = vmatpush.msra.mxu0 %v596
      %632 = vmatpush.msra.mxu0 %v594
      %633 = vmatpush.msra.mxu0 %v592
      %634 = vmatpush.msra.mxu0 %v590
      %635 = vmatmul.f32.gmra.mxu0 %v597
      %v636 = vpop.f32.mrf.mxu0
      %v637 = vadd.f32 0.0, %v636
      %638 = vdwg.mxu0
      %s639 = scalar_lea.vmem %s225, 6
      %v640 = vld [vmem:[%s639] sm:$0x3]
      %v641 = vadd.f32 %v640, %v617
      %v642 = vld [vmem:[%s232] sm:$0x3]
      %v644 = vrot.slane %v637, 2
      %v646 = vadd.f32 %v642, %v644
      %v648 = vrot.slane %v646, 6
      %v650 = vsel %vm321, %v641, %v648
      %v651 = vxor.u32 %v650, 2147483648
      %v652 = vmul.f32 %v651, 1.442695
      %v653 = vpow.pop %v652
      %v654 = vadd.f32 %v653, 1.0
      %v655 = vrcp.pop %v654
      %v656 = vmul.f32 %v654, %v655
      %v657 = vsub.f32 1.0, %v656
      %v658 = vmul.f32 %v655, %v657
      %v659 = vadd.f32 %v655, %v658
      %vm660 = vweird.f32 %v654
      %vm661 = vweird.f32 %v655
      %vm662 = vmor %vm660, %vm661
      %v663 = vsel %vm662, %v655, %v659
      %v664 = vand.u32 2147483647, %v654
      %vm665 = vcmp.eq.f32.partialorder %v664, 8.507059e+37
      %v666 = vand.u32 %v654, 2147483648
      %v667 = vor.u32 1.1754944e-38, %v666
      %v668 = vsel %vm665, %v667, %v663
      %v669 = vmul.f32 1.0, %v668
      %v670 = vtanh.pop %v650
      %v671 = vmul.f32 %v669, %v574
      %673 = vrot.lane.b32.xlu0 %v670, 64
      %v674 = vpop.permute.xlu0 %673
      %v676 = vmul.f32 %v669, %v674
      %678 = vrot.lane.b32.xlu0 %v676, 32
      %v679 = vpop.permute.xlu0 %678
      %v681 = vadd.f32 %v671, %v679
      %v682 = vtanh.pop %v681
      %684 = vrot.lane.b32.xlu0 %v682, 64
      %v685 = vpop.permute.xlu0 %684
      %v687 = vmul.f32 %v669, %v685
      %689 = vrot.lane.b32.xlu0 %v687, 32
      %v690 = vpop.permute.xlu0 %689
      %s692 = scalar_lea.vmem %s239, 6
      %693 = vst.msk [vmem:[%s692] sm:$0x3] %vm368, %v690
      %694 = vst.msk [vmem:[%s246 - $0x2] sm:$0xc] %vm371, %v690
      %vm695 = vcmask 257024
      %696 = vst.msk [vmem:[#allocation2] sm:$0xf] %vm695, %v690
      %698 = vrot.lane.b32.xlu0 %v681, 96
      %v699 = vpop.permute.xlu0 %698
      %701 = vst.msk [vmem:[#allocation3] sm:$0xf] %vm695, %v699
      %s702 = smul.u32 4, %s16
      %p703 = scmp.lt.s32.totalorder %s702, 7
      %s704 = scalar_select %p703, %s702, 7
      %s705 = smul.addr %s704, 2
      %s706 = scalar_lea.vmem %s3, %s705
      %s707 = ssub.s32 1, %s16
      %s708 = smul.u32 4, %s707
      %p709 = scmp.lt.s32.totalorder %s708, 7
      %s710 = scalar_select %p709, %s708, 7
      %s711 = smul.addr %s710, 2
      %s712 = scalar_lea.vmem %s4, %s711
      // Predicated region
      $region37: #{bidirectional_lstm.4} parent=31 // pred_check
        %p713 = pneg %p109
      $region38: #{bidirectional_lstm.4} parent=31 // pred_check_branch
        %715 = sbr.rel (%p713) target = $region40
      $region39: #{bidirectional_lstm.4} parent=31 // pred_region
        %s716 = smul.u32 4, %s16
      $region40: #{bidirectional_lstm.4} parent=31 // pred_fallthru
        _
      // Predicated region
      $region41: #{bidirectional_lstm.4} parent=31 // pred_check
        %p717 = pneg %p137
      $region42: #{bidirectional_lstm.4} parent=31 // pred_check_branch
        %719 = sbr.rel (%p717) target = $region44
      $region43: #{bidirectional_lstm.4} parent=31 // pred_region
        %s720 = ssub.s32 1, %s16
        %s721 = smul.u32 4, %s720
      $region44: #{bidirectional_lstm.4} parent=31 // pred_fallthru
        _
    $region32: #{bidirectional_lstm.4} parent=5 // pred_fallthru
      _
    %p722 = scmp.le.s32.totalorder 2, %s11
    // Predicated region
    $region45: #{bidirectional_lstm.4} parent=5 // pred_check
      %p723 = pneg %p722
    $region46: #{bidirectional_lstm.4} parent=5 // pred_check_branch
      %725 = sbr.rel (%p723) target = $region48
    $region47: #{bidirectional_lstm.4} parent=5 // pred_region
      %s726 = ssub.s32 %s11, 2
      // Predicated region
      $region49: #{bidirectional_lstm.4} parent=47 // pred_check
        %p727 = pneg %p115
      $region50: #{bidirectional_lstm.4} parent=47 // pred_check_branch
        %729 = sbr.rel (%p727) target = $region52
      $region51: #{bidirectional_lstm.4} parent=47 // pred_region
        %s730 = smul.u32 4, %s17
        %p731 = scmp.lt.s32.totalorder %s730, 7
        %s732 = scalar_select %p731, %s730, 7
        %s733 = smul.addr %s732, 2
        %s734 = scalar_lea.vmem %s3, %s733
      $region52: #{bidirectional_lstm.4} parent=47 // pred_fallthru
        _
      // Predicated region
      $region53: #{bidirectional_lstm.4} parent=47 // pred_check
        %p735 = pneg %p143
      $region54: #{bidirectional_lstm.4} parent=47 // pred_check_branch
        %737 = sbr.rel (%p735) target = $region56
      $region55: #{bidirectional_lstm.4} parent=47 // pred_region
        %s738 = ssub.s32 1, %s17
        %s739 = smul.u32 4, %s738
        %p740 = scmp.lt.s32.totalorder %s739, 7
        %s741 = scalar_select %p740, %s739, 7
        %s742 = smul.addr %s741, 2
        %s743 = scalar_lea.vmem %s4, %s742
      $region56: #{bidirectional_lstm.4} parent=47 // pred_fallthru
        _
    $region48: #{bidirectional_lstm.4} parent=5 // pred_fallthru
      _
  $region6: #{bidirectional_lstm.4} parent=0 // loop_footer
    %s15 = sadd.s32 1, %s11
  $region7: #{bidirectional_lstm.4} parent=0 // loop_footer_branch
    %10 = sbr.rel target = $region3
  $region8: #{bidirectional_lstm.4} parent=0 // loop_exit
    _

</llo_original>
